<compile_context>
chip_gen: v7x
topology: tpu7x:2x2x1
jax: 0.10.0
libtpu: 0.0.40
codegen_flags: <defaults>
</compile_context>

<pallas_src>
import jax
import jax.numpy as jnp
from jax.experimental import pallas as pl
from jax.experimental.pallas import tpu as pltpu


def _round_up(x, m):
    return ((x + m - 1) // m) * m


# ----------------------------- Pallas kernel ------------------------------

def fused_forward_kernel(patch_ref, wc_ref, bc_ref, pool_ref,
                         wcls_ref, bcls_ref, w1_ref, b1_ref,
                         w2_ref, b2_ref, o_ref):
    """Fused synthetic-backbone + fc-head forward (eval mode, dropout = identity).

    patch_ref: (Mp, Kp)  bf16  im2col 3x3 patches, batch folded into rows
    wc_ref:    (Kp, Cp)  bf16  conv weight (im2col form, zero padded)
    bc_ref:    (1, Cp)   f32   conv bias (zero padded)
    pool_ref:  (B, Mp)   bf16  block-diagonal 1/HW averaging matrix (GAP)
    wcls_ref:  (Cp, C1)  bf16  backbone classifier weight (-> 1000, padded)
    bcls_ref:  (1, C1)   f32
    w1_ref:    (C1, C2)  bf16  head Linear(1000, 512) (zero-padded rows)
    b1_ref:    (1, C2)   f32
    w2_ref:    (C2, C3)  bf16  head Linear(512, num_classes) (zero-padded cols)
    b2_ref:    (1, C3)   f32
    o_ref:     (B, C3)   f32   padded logits (first num_classes cols valid)
    """
    # conv3x3 as one big matmul over M = B*H*W rows, f32 accumulation on MXU.
    y = jnp.dot(patch_ref[...], wc_ref[...],
                preferred_element_type=jnp.float32)
    y = jnp.maximum(y + bc_ref[...], 0.0)                       # bias + ReLU (f32)

    # Global average pool per batch element, expressed as an MXU matmul.
    feats = jnp.dot(pool_ref[...], y.astype(jnp.bfloat16),
                    preferred_element_type=jnp.float32)         # (B, Cp)

    # Backbone classifier (-> 1000) and fc head (1000 -> 512 -> num_classes).
    h = jnp.dot(feats.astype(jnp.bfloat16), wcls_ref[...],
                preferred_element_type=jnp.float32) + bcls_ref[...]
    h = jnp.dot(h.astype(jnp.bfloat16), w1_ref[...],
                preferred_element_type=jnp.float32) + b1_ref[...]
    o_ref[...] = jnp.dot(h.astype(jnp.bfloat16), w2_ref[...],
                         preferred_element_type=jnp.float32) + b2_ref[...]


# ------------------------------ JAX wrapper -------------------------------

def im2col_3x3_same(x_nhwc):
    """3x3 SAME-padding patch extraction (plain-JAX glue)."""
    B, H, W, C = x_nhwc.shape
    xp = jnp.pad(x_nhwc, ((0, 0), (1, 1), (1, 1), (0, 0)))
    patches = []
    for dy in range(3):
        for dx in range(3):
            patches.append(xp[:, dy:dy + H, dx:dx + W, :])
    patches = jnp.concatenate(patches, axis=-1)                 # (B, H, W, 9*C)
    return patches.reshape(B * H * W, 9 * C)                    # (B*HW, 9*C)


def timm_model_forward(x_nchw, params):
    (w_conv, b_conv, w_cls, b_cls, w_fc1, b_fc1, w_fc2, b_fc2) = params
    B, C, H, W = x_nchw.shape
    HW = H * W
    M = B * HW
    K = 9 * C
    Cout = w_conv.shape[1]
    C_cls = w_cls.shape[1]                 # 1000
    C_h = w_fc1.shape[1]                   # 512
    num_classes = w_fc2.shape[1]

    # Lane-friendly padded sizes.
    Mp = _round_up(M, 8)
    Kp = _round_up(K, 128)
    Cp = _round_up(Cout, 128)
    C1 = _round_up(C_cls, 128)             # 1000 -> 1024
    C2 = _round_up(C_h, 128)               # 512
    C3 = _round_up(num_classes, 128)       # num_classes -> 128

    x_nhwc = jnp.transpose(x_nchw, (0, 2, 3, 1)).astype(jnp.float32)
    # TODO(synk): for a real high-resolution timm backbone, build the 9 shifted
    # views in-kernel from the padded image (and tile HW) instead of writing the
    # 9x im2col slab through HBM; at this toy size the bf16 slab is ~128 KiB.
    patches = im2col_3x3_same(x_nhwc)                                      # (M, K)
    patches = jnp.pad(patches, ((0, Mp - M), (0, Kp - K))).astype(jnp.bfloat16)

    # Block-diagonal averaging matrix: GAP as a matmul (1/HW exact in bf16).
    pool = jnp.repeat(jnp.eye(B, dtype=jnp.float32), HW, axis=1) / HW      # (B, M)
    pool = jnp.pad(pool, ((0, 0), (0, Mp - M))).astype(jnp.bfloat16)

    wc = jnp.pad(w_conv, ((0, Kp - K), (0, Cp - Cout))).astype(jnp.bfloat16)
    bc = jnp.pad(b_conv, ((0, 0), (0, Cp - Cout)))
    wcls = jnp.pad(w_cls, ((0, Cp - Cout), (0, C1 - C_cls))).astype(jnp.bfloat16)
    bcls = jnp.pad(b_cls, ((0, 0), (0, C1 - C_cls)))
    w1 = jnp.pad(w_fc1, ((0, C1 - C_cls), (0, C2 - C_h))).astype(jnp.bfloat16)
    b1 = jnp.pad(b_fc1, ((0, 0), (0, C2 - C_h)))
    w2 = jnp.pad(w_fc2, ((0, C2 - C_h), (0, C3 - num_classes))).astype(jnp.bfloat16)
    b2 = jnp.pad(b_fc2, ((0, 0), (0, C3 - num_classes)))

    flops = 2 * (Mp * Kp * Cp + B * Mp * Cp + B * Cp * C1
                 + B * C1 * C2 + B * C2 * C3)
    bytes_accessed = sum(int(a.size) * a.dtype.itemsize
                         for a in (patches, wc, bc, pool, wcls, bcls,
                                   w1, b1, w2, b2))
    bytes_accessed += B * C3 * 4

    out_p = pl.pallas_call(
        fused_forward_kernel,
        out_shape=jax.ShapeDtypeStruct((B, C3), jnp.float32),
        cost_estimate=pl.CostEstimate(flops=flops, transcendentals=0,
                                      bytes_accessed=bytes_accessed),
        compiler_params=pltpu.CompilerParams(vmem_limit_bytes=32 * 1024 * 1024),
    )(patches, wc, bc, pool, wcls, bcls, w1, b1, w2, b2)

    return out_p[:, :num_classes]


def init_params(key, in_channels=4, conv_out=8, num_classes=10):
    K = 9 * in_channels
    ks = jax.random.split(key, 8)

    def dense(k, shape, fan_in):
        return (jax.random.normal(k, shape, jnp.float32) /
                jnp.sqrt(jnp.float32(fan_in)))

    w_conv = dense(ks[0], (K, conv_out), K)
    b_conv = dense(ks[1], (1, conv_out), K)
    w_cls = dense(ks[2], (conv_out, 1000), conv_out)
    b_cls = dense(ks[3], (1, 1000), conv_out)
    w_fc1 = dense(ks[4], (1000, 512), 1000)
    b_fc1 = dense(ks[5], (1, 512), 1000)
    w_fc2 = dense(ks[6], (512, num_classes), 512)
    b_fc2 = dense(ks[7], (1, num_classes), 512)
    return (w_conv, b_conv, w_cls, b_cls, w_fc1, b_fc1, w_fc2, b_fc2)


if __name__ == "__main__":
    key = jax.random.PRNGKey(0)
    k_x, k_p = jax.random.split(key)

    # PyTorch-style NCHW input: batch=2, channels=4, spatial=16x16.
    x = jax.random.normal(k_x, (2, 4, 16, 16), jnp.float32)
    params = init_params(k_p, in_channels=4, conv_out=8, num_classes=10)

    out = jax.jit(timm_model_forward)(x, params)
    out = jax.block_until_ready(out)
    assert out.shape == (2, 10) and out.dtype == jnp.float32
    print("KERNEL_OK")
</pallas_src>

<mosaic_0001>
module attributes {stable_mosaic.version = 11 : i64} {
  func.func @fused_forward_kernel(%arg0: memref<512x128xbf16, #tpu.memory_space<vmem>>, %arg1: memref<128x128xbf16, #tpu.memory_space<vmem>>, %arg2: memref<1x128xf32, #tpu.memory_space<vmem>>, %arg3: memref<2x512xbf16, #tpu.memory_space<vmem>>, %arg4: memref<128x1024xbf16, #tpu.memory_space<vmem>>, %arg5: memref<1x1024xf32, #tpu.memory_space<vmem>>, %arg6: memref<1024x512xbf16, #tpu.memory_space<vmem>>, %arg7: memref<1x512xf32, #tpu.memory_space<vmem>>, %arg8: memref<512x128xbf16, #tpu.memory_space<vmem>>, %arg9: memref<1x128xf32, #tpu.memory_space<vmem>>, %arg10: memref<2x128xf32, #tpu.memory_space<vmem>>) attributes {dimension_semantics = [], scalar_prefetch = 0 : i64, scratch_operands = 0 : i64, tpu.core_type = #tpu.core_type<tc>} {
    %c0 = arith.constant 0 : index
    %c0_0 = arith.constant 0 : index
    %0 = vector.load %arg0[%c0, %c0_0] : memref<512x128xbf16, #tpu.memory_space<vmem>>, vector<512x128xbf16>
    %c0_1 = arith.constant 0 : index
    %c0_2 = arith.constant 0 : index
    %1 = vector.load %arg1[%c0_1, %c0_2] : memref<128x128xbf16, #tpu.memory_space<vmem>>, vector<128x128xbf16>
    %cst = arith.constant dense<0.000000e+00> : vector<512x128xf32>
    %2 = tpu.matmul %0, %1, %cst {dimension_numbers = #tpu.dot_dimension_numbers<[1], [0], [0], [1], [0, 0, 1, 1], [], []>} : vector<512x128xbf16>, vector<128x128xbf16>, vector<512x128xf32> -> vector<512x128xf32>
    %c0_3 = arith.constant 0 : index
    %c0_4 = arith.constant 0 : index
    %3 = vector.load %arg2[%c0_3, %c0_4] : memref<1x128xf32, #tpu.memory_space<vmem>>, vector<1x128xf32>
    %4 = vector.broadcast %3 : vector<1x128xf32> to vector<512x128xf32>
    %5 = arith.addf %2, %4 : vector<512x128xf32>
    %cst_5 = arith.constant 0.000000e+00 : f32
    %6 = vector.broadcast %cst_5 : f32 to vector<512x128xf32>
    %7 = arith.maximumf %5, %6 : vector<512x128xf32>
    %c0_6 = arith.constant 0 : index
    %c0_7 = arith.constant 0 : index
    %8 = vector.load %arg3[%c0_6, %c0_7] : memref<2x512xbf16, #tpu.memory_space<vmem>>, vector<2x512xbf16>
    %9 = arith.truncf %7 : vector<512x128xf32> to vector<512x128xbf16>
    %cst_8 = arith.constant dense<0.000000e+00> : vector<2x128xf32>
    %10 = tpu.matmul %8, %9, %cst_8 {dimension_numbers = #tpu.dot_dimension_numbers<[1], [0], [0], [1], [0, 0, 1, 1], [], []>} : vector<2x512xbf16>, vector<512x128xbf16>, vector<2x128xf32> -> vector<2x128xf32>
    %11 = arith.truncf %10 : vector<2x128xf32> to vector<2x128xbf16>
    %c0_9 = arith.constant 0 : index
    %c0_10 = arith.constant 0 : index
    %12 = vector.load %arg4[%c0_9, %c0_10] : memref<128x1024xbf16, #tpu.memory_space<vmem>>, vector<128x1024xbf16>
    %cst_11 = arith.constant dense<0.000000e+00> : vector<2x1024xf32>
    %13 = tpu.matmul %11, %12, %cst_11 {dimension_numbers = #tpu.dot_dimension_numbers<[1], [0], [0], [1], [0, 0, 1, 1], [], []>} : vector<2x128xbf16>, vector<128x1024xbf16>, vector<2x1024xf32> -> vector<2x1024xf32>
    %c0_12 = arith.constant 0 : index
    %c0_13 = arith.constant 0 : index
    %14 = vector.load %arg5[%c0_12, %c0_13] : memref<1x1024xf32, #tpu.memory_space<vmem>>, vector<1x1024xf32>
    %15 = vector.broadcast %14 : vector<1x1024xf32> to vector<2x1024xf32>
    %16 = arith.addf %13, %15 : vector<2x1024xf32>
    %17 = arith.truncf %16 : vector<2x1024xf32> to vector<2x1024xbf16>
    %c0_14 = arith.constant 0 : index
    %c0_15 = arith.constant 0 : index
    %18 = vector.load %arg6[%c0_14, %c0_15] : memref<1024x512xbf16, #tpu.memory_space<vmem>>, vector<1024x512xbf16>
    %cst_16 = arith.constant dense<0.000000e+00> : vector<2x512xf32>
    %19 = tpu.matmul %17, %18, %cst_16 {dimension_numbers = #tpu.dot_dimension_numbers<[1], [0], [0], [1], [0, 0, 1, 1], [], []>} : vector<2x1024xbf16>, vector<1024x512xbf16>, vector<2x512xf32> -> vector<2x512xf32>
    %c0_17 = arith.constant 0 : index
    %c0_18 = arith.constant 0 : index
    %20 = vector.load %arg7[%c0_17, %c0_18] : memref<1x512xf32, #tpu.memory_space<vmem>>, vector<1x512xf32>
    %21 = vector.broadcast %20 : vector<1x512xf32> to vector<2x512xf32>
    %22 = arith.addf %19, %21 : vector<2x512xf32>
    %23 = arith.truncf %22 : vector<2x512xf32> to vector<2x512xbf16>
    %c0_19 = arith.constant 0 : index
    %c0_20 = arith.constant 0 : index
    %24 = vector.load %arg8[%c0_19, %c0_20] : memref<512x128xbf16, #tpu.memory_space<vmem>>, vector<512x128xbf16>
    %cst_21 = arith.constant dense<0.000000e+00> : vector<2x128xf32>
    %25 = tpu.matmul %23, %24, %cst_21 {dimension_numbers = #tpu.dot_dimension_numbers<[1], [0], [0], [1], [0, 0, 1, 1], [], []>} : vector<2x512xbf16>, vector<512x128xbf16>, vector<2x128xf32> -> vector<2x128xf32>
    %c0_22 = arith.constant 0 : index
    %c0_23 = arith.constant 0 : index
    %26 = vector.load %arg9[%c0_22, %c0_23] : memref<1x128xf32, #tpu.memory_space<vmem>>, vector<1x128xf32>
    %27 = vector.broadcast %26 : vector<1x128xf32> to vector<2x128xf32>
    %28 = arith.addf %25, %27 : vector<2x128xf32>
    %c0_24 = arith.constant 0 : index
    %c0_25 = arith.constant 0 : index
    %29 = vector.load %arg10[%c0_24, %c0_25] : memref<2x128xf32, #tpu.memory_space<vmem>>, vector<2x128xf32>
    tpu.vector_store %arg10[%c0_24, %c0_25], %28 {strides = array<i32>} : memref<2x128xf32, #tpu.memory_space<vmem>>, vector<2x128xf32>,
    return
  }
}

</mosaic_0001>

<llo_original>
// kernel: timm_model_forward.1
$region0: #{timm_model_forward.1}
  #allocation0 [shape = 'u32[]', space=smem, size = 0x4, offset = 0x4, fixed_abs, tag = 'smem constant byte address 0x4 - core index']
  #allocation1 [shape = 'u32[144,128]{1,0:T(1,128)}', space=vmem, size = 0x12000, scoped, tag = 'internal scratch']
  %s0 = inlined_call_operand.vmem [shape: bf16[512,128], index: 0, kind: input, shape index: {}]
  %s1 = inlined_call_operand.vmem [shape: bf16[128,128], index: 1, kind: input, shape index: {}]
  %s2 = inlined_call_operand.vmem [shape: f32[1,128], index: 2, kind: input, shape index: {}]
  %s3 = inlined_call_operand.vmem [shape: bf16[2,512], index: 3, kind: input, shape index: {}]
  %s4 = inlined_call_operand.vmem [shape: bf16[128,1024], index: 4, kind: input, shape index: {}]
  %s5 = inlined_call_operand.vmem [shape: f32[1,1024], index: 5, kind: input, shape index: {}]
  %s6 = inlined_call_operand.vmem [shape: bf16[1024,512], index: 6, kind: input, shape index: {}]
  %s7 = inlined_call_operand.vmem [shape: f32[1,512], index: 7, kind: input, shape index: {}]
  %s8 = inlined_call_operand.vmem [shape: bf16[512,128], index: 8, kind: input, shape index: {}]
  %s9 = inlined_call_operand.vmem [shape: f32[1,128], index: 9, kind: input, shape index: {}]
  %s10 = inlined_call_operand.hbm [shape: f32[2,128], index: 10, kind: output, shape index: {}]
  %s11 = sld [smem:[#allocation0]]
  $region50: #{timm_model_forward.1} parent=0
    _
  %s13 = ssub.s32 1, %s11
  %s14 = scalar_select 0, %s13, %s11
  $region1: #{timm_model_forward.1} parent=0
    #allocation2 [shape = 'u8[1024]{0}', space=vmem, size = 0x400, scoped, tag = 'output window, operand 0, single buffered']
    #allocation3 [shape = 's32[1]{0}', space=sflag, size = 0x4, scoped, tag = 'scoped memory for timm_model_forward.1']
    %15 = vsyncpa [#allocation3], 0
    // Predicated region
    $region2: #{timm_model_forward.1} parent=1 // pred_check
      _
    $region3: #{timm_model_forward.1} parent=1 // pred_check_branch
      %17 = sbr.rel (0) target = $region5
    $region4: #{timm_model_forward.1} parent=1 // pred_region
      _
    $region5: #{timm_model_forward.1} parent=1 // pred_fallthru
      _
    // Predicated region
    $region6: #{timm_model_forward.1} parent=1 // pred_check
      _
    $region7: #{timm_model_forward.1} parent=1 // pred_check_branch
      %19 = sbr.rel (0) target = $region9
    $region8: #{timm_model_forward.1} parent=1 // pred_region
      _
    $region9: #{timm_model_forward.1} parent=1 // pred_fallthru
      _
    // Predicated region
    $region10: #{timm_model_forward.1} parent=1 // pred_check
      _
    $region11: #{timm_model_forward.1} parent=1 // pred_check_branch
      %21 = sbr.rel (0) target = $region13
    $region12: #{timm_model_forward.1} parent=1 // pred_region
      _
    $region13: #{timm_model_forward.1} parent=1 // pred_fallthru
      _
    // Predicated region
    $region14: #{timm_model_forward.1} parent=1 // pred_check
      _
    $region15: #{timm_model_forward.1} parent=1 // pred_check_branch
      %23 = sbr.rel (0) target = $region17
    $region16: #{timm_model_forward.1} parent=1 // pred_region
      _
    $region17: #{timm_model_forward.1} parent=1 // pred_fallthru
      _
    // Predicated region
    $region18: #{timm_model_forward.1} parent=1 // pred_check
      _
    $region19: #{timm_model_forward.1} parent=1 // pred_check_branch
      %25 = sbr.rel (0) target = $region21
    $region20: #{timm_model_forward.1} parent=1 // pred_region
      _
    $region21: #{timm_model_forward.1} parent=1 // pred_fallthru
      _
    // Predicated region
    $region22: #{timm_model_forward.1} parent=1 // pred_check
      _
    $region23: #{timm_model_forward.1} parent=1 // pred_check_branch
      %27 = sbr.rel (0) target = $region25
    $region24: #{timm_model_forward.1} parent=1 // pred_region
      _
    $region25: #{timm_model_forward.1} parent=1 // pred_fallthru
      _
    // Predicated region
    $region26: #{timm_model_forward.1} parent=1 // pred_check
      _
    $region27: #{timm_model_forward.1} parent=1 // pred_check_branch
      %29 = sbr.rel (0) target = $region29
    $region28: #{timm_model_forward.1} parent=1 // pred_region
      _
    $region29: #{timm_model_forward.1} parent=1 // pred_fallthru
      _
    // Predicated region
    $region30: #{timm_model_forward.1} parent=1 // pred_check
      _
    $region31: #{timm_model_forward.1} parent=1 // pred_check_branch
      %31 = sbr.rel (0) target = $region33
    $region32: #{timm_model_forward.1} parent=1 // pred_region
      _
    $region33: #{timm_model_forward.1} parent=1 // pred_fallthru
      _
    // Predicated region
    $region34: #{timm_model_forward.1} parent=1 // pred_check
      _
    $region35: #{timm_model_forward.1} parent=1 // pred_check_branch
      %33 = sbr.rel (0) target = $region37
    $region36: #{timm_model_forward.1} parent=1 // pred_region
      _
    $region37: #{timm_model_forward.1} parent=1 // pred_fallthru
      _
    // Predicated region
    $region38: #{timm_model_forward.1} parent=1 // pred_check
      _
    $region39: #{timm_model_forward.1} parent=1 // pred_check_branch
      %35 = sbr.rel (0) target = $region41
    $region40: #{timm_model_forward.1} parent=1 // pred_region
      _
    $region41: #{timm_model_forward.1} parent=1 // pred_fallthru
      _
    %v37 = vld [vmem:[%s0] sm:$0xf]
    %v38 = vld [vmem:[%s0 + $0x4] sm:$0xf]
    %v39 = vld [vmem:[%s0 + $0x8] sm:$0xf]
    %v40 = vld [vmem:[%s0 + $0xc] sm:$0xf]
    %v41 = vld [vmem:[%s0 + $0x10] sm:$0xf]
    %v42 = vld [vmem:[%s0 + $0x14] sm:$0xf]
    %v43 = vld [vmem:[%s0 + $0x18] sm:$0xf]
    %v44 = vld [vmem:[%s0 + $0x1c] sm:$0xf]
    %v45 = vld [vmem:[%s0 + $0x20] sm:$0xf]
    %v46 = vld [vmem:[%s0 + $0x24] sm:$0xf]
    %v47 = vld [vmem:[%s0 + $0x28] sm:$0xf]
    %v48 = vld [vmem:[%s0 + $0x2c] sm:$0xf]
    %v49 = vld [vmem:[%s0 + $0x30] sm:$0xf]
    %v50 = vld [vmem:[%s0 + $0x34] sm:$0xf]
    %v51 = vld [vmem:[%s0 + $0x38] sm:$0xf]
    %v52 = vld [vmem:[%s0 + $0x3c] sm:$0xf]
    %v53 = vld [vmem:[%s0 + $0x40] sm:$0xf]
    %v54 = vld [vmem:[%s0 + $0x44] sm:$0xf]
    %v55 = vld [vmem:[%s0 + $0x48] sm:$0xf]
    %v56 = vld [vmem:[%s0 + $0x4c] sm:$0xf]
    %v57 = vld [vmem:[%s0 + $0x50] sm:$0xf]
    %v58 = vld [vmem:[%s0 + $0x54] sm:$0xf]
    %v59 = vld [vmem:[%s0 + $0x58] sm:$0xf]
    %v60 = vld [vmem:[%s0 + $0x5c] sm:$0xf]
    %v61 = vld [vmem:[%s0 + $0x60] sm:$0xf]
    %v62 = vld [vmem:[%s0 + $0x64] sm:$0xf]
    %v63 = vld [vmem:[%s0 + $0x68] sm:$0xf]
    %v64 = vld [vmem:[%s0 + $0x6c] sm:$0xf]
    %v65 = vld [vmem:[%s0 + $0x70] sm:$0xf]
    %v66 = vld [vmem:[%s0 + $0x74] sm:$0xf]
    %v67 = vld [vmem:[%s0 + $0x78] sm:$0xf]
    %v68 = vld [vmem:[%s0 + $0x7c] sm:$0xf]
    %v69 = vld [vmem:[%s0 + $0x80] sm:$0xf]
    %v70 = vld [vmem:[%s0 + $0x84] sm:$0xf]
    %v71 = vld [vmem:[%s0 + $0x88] sm:$0xf]
    %v72 = vld [vmem:[%s0 + $0x8c] sm:$0xf]
    %v73 = vld [vmem:[%s0 + $0x90] sm:$0xf]
    %v74 = vld [vmem:[%s0 + $0x94] sm:$0xf]
    %v75 = vld [vmem:[%s0 + $0x98] sm:$0xf]
    %v76 = vld [vmem:[%s0 + $0x9c] sm:$0xf]
    %v77 = vld [vmem:[%s0 + $0xa0] sm:$0xf]
    %v78 = vld [vmem:[%s0 + $0xa4] sm:$0xf]
    %v79 = vld [vmem:[%s0 + $0xa8] sm:$0xf]
    %v80 = vld [vmem:[%s0 + $0xac] sm:$0xf]
    %v81 = vld [vmem:[%s0 + $0xb0] sm:$0xf]
    %v82 = vld [vmem:[%s0 + $0xb4] sm:$0xf]
    %v83 = vld [vmem:[%s0 + $0xb8] sm:$0xf]
    %v84 = vld [vmem:[%s0 + $0xbc] sm:$0xf]
    %v85 = vld [vmem:[%s0 + $0xc0] sm:$0xf]
    %v86 = vld [vmem:[%s0 + $0xc4] sm:$0xf]
    %v87 = vld [vmem:[%s0 + $0xc8] sm:$0xf]
    %v88 = vld [vmem:[%s0 + $0xcc] sm:$0xf]
    %v89 = vld [vmem:[%s0 + $0xd0] sm:$0xf]
    %v90 = vld [vmem:[%s0 + $0xd4] sm:$0xf]
    %v91 = vld [vmem:[%s0 + $0xd8] sm:$0xf]
    %v92 = vld [vmem:[%s0 + $0xdc] sm:$0xf]
    %v93 = vld [vmem:[%s0 + $0xe0] sm:$0xf]
    %v94 = vld [vmem:[%s0 + $0xe4] sm:$0xf]
    %v95 = vld [vmem:[%s0 + $0xe8] sm:$0xf]
    %v96 = vld [vmem:[%s0 + $0xec] sm:$0xf]
    %v97 = vld [vmem:[%s0 + $0xf0] sm:$0xf]
    %v98 = vld [vmem:[%s0 + $0xf4] sm:$0xf]
    %v99 = vld [vmem:[%s0 + $0xf8] sm:$0xf]
    %v100 = vld [vmem:[%s0 + $0xfc] sm:$0xf]
    %v101 = vld [vmem:[%s1] sm:$0xf]
    %v102 = vld [vmem:[%s1 + $0x4] sm:$0xf]
    %v103 = vld [vmem:[%s1 + $0x8] sm:$0xf]
    %v104 = vld [vmem:[%s1 + $0xc] sm:$0xf]
    %v105 = vld [vmem:[%s1 + $0x10] sm:$0xf]
    %v106 = vld [vmem:[%s1 + $0x14] sm:$0xf]
    %v107 = vld [vmem:[%s1 + $0x18] sm:$0xf]
    %v108 = vld [vmem:[%s1 + $0x1c] sm:$0xf]
    %v109 = vld [vmem:[%s1 + $0x20] sm:$0xf]
    %v110 = vld [vmem:[%s1 + $0x24] sm:$0xf]
    %v111 = vld [vmem:[%s1 + $0x28] sm:$0xf]
    %v112 = vld [vmem:[%s1 + $0x2c] sm:$0xf]
    %v113 = vld [vmem:[%s1 + $0x30] sm:$0xf]
    %v114 = vld [vmem:[%s1 + $0x34] sm:$0xf]
    %v115 = vld [vmem:[%s1 + $0x38] sm:$0xf]
    %v116 = vld [vmem:[%s1 + $0x3c] sm:$0xf]
    %v117 = vld [vmem:[%s2] sm:$0x1]
    %v119 = vlaneseq
    %v120 = vshrl.u32 %v119, 7
    %v121 = vsub.s32 0, %v120
    %v122 = vrot.slane %v117, %v121
    %v188 = vunpack.c.l.b16 %v37
    %v189 = vunpack.c.l.b16 %v38
    %v190 = vunpack.c.l.b16 %v39
    %v191 = vunpack.c.l.b16 %v40
    %v192 = vunpack.c.l.b16 %v41
    %v193 = vunpack.c.l.b16 %v42
    %v194 = vunpack.c.l.b16 %v43
    %v195 = vunpack.c.l.b16 %v44
    %v196 = vunpack.c.l.b16 %v45
    %v197 = vunpack.c.l.b16 %v46
    %v198 = vunpack.c.l.b16 %v47
    %v199 = vunpack.c.l.b16 %v48
    %v200 = vunpack.c.l.b16 %v49
    %v201 = vunpack.c.l.b16 %v50
    %v202 = vunpack.c.l.b16 %v51
    %v203 = vunpack.c.l.b16 %v52
    %v204 = vunpack.c.l.b16 %v53
    %v205 = vunpack.c.l.b16 %v54
    %v206 = vunpack.c.l.b16 %v55
    %v207 = vunpack.c.l.b16 %v56
    %v208 = vunpack.c.l.b16 %v57
    %v209 = vunpack.c.l.b16 %v58
    %v210 = vunpack.c.l.b16 %v59
    %v211 = vunpack.c.l.b16 %v60
    %v212 = vunpack.c.l.b16 %v61
    %v213 = vunpack.c.l.b16 %v62
    %v214 = vunpack.c.l.b16 %v63
    %v215 = vunpack.c.l.b16 %v64
    %v216 = vunpack.c.l.b16 %v65
    %v217 = vunpack.c.l.b16 %v66
    %v218 = vunpack.c.l.b16 %v67
    %v219 = vunpack.c.l.b16 %v68
    %v220 = vunpack.c.l.b16 %v69
    %v221 = vunpack.c.l.b16 %v70
    %v222 = vunpack.c.l.b16 %v71
    %v223 = vunpack.c.l.b16 %v72
    %v224 = vunpack.c.l.b16 %v73
    %v225 = vunpack.c.l.b16 %v74
    %v226 = vunpack.c.l.b16 %v75
    %v227 = vunpack.c.l.b16 %v76
    %v228 = vunpack.c.l.b16 %v77
    %v229 = vunpack.c.l.b16 %v78
    %v230 = vunpack.c.l.b16 %v79
    %v231 = vunpack.c.l.b16 %v80
    %v232 = vunpack.c.l.b16 %v81
    %v233 = vunpack.c.l.b16 %v82
    %v234 = vunpack.c.l.b16 %v83
    %v235 = vunpack.c.l.b16 %v84
    %v236 = vunpack.c.l.b16 %v85
    %v237 = vunpack.c.l.b16 %v86
    %v238 = vunpack.c.l.b16 %v87
    %v239 = vunpack.c.l.b16 %v88
    %v240 = vunpack.c.l.b16 %v89
    %v241 = vunpack.c.l.b16 %v90
    %v242 = vunpack.c.l.b16 %v91
    %v243 = vunpack.c.l.b16 %v92
    %v244 = vunpack.c.l.b16 %v93
    %v245 = vunpack.c.l.b16 %v94
    %v246 = vunpack.c.l.b16 %v95
    %v247 = vunpack.c.l.b16 %v96
    %v248 = vunpack.c.l.b16 %v97
    %v249 = vunpack.c.l.b16 %v98
    %v250 = vunpack.c.l.b16 %v99
    %v251 = vunpack.c.l.b16 %v100
    %v252 = vpack.c.b16 %v189, %v188
    %v253 = vpack.c.b16 %v191, %v190
    %v254 = vpack.c.b16 %v193, %v192
    %v255 = vpack.c.b16 %v195, %v194
    %v256 = vpack.c.b16 %v197, %v196
    %v257 = vpack.c.b16 %v199, %v198
    %v258 = vpack.c.b16 %v201, %v200
    %v259 = vpack.c.b16 %v203, %v202
    %v260 = vpack.c.b16 %v205, %v204
    %v261 = vpack.c.b16 %v207, %v206
    %v262 = vpack.c.b16 %v209, %v208
    %v263 = vpack.c.b16 %v211, %v210
    %v264 = vpack.c.b16 %v213, %v212
    %v265 = vpack.c.b16 %v215, %v214
    %v266 = vpack.c.b16 %v217, %v216
    %v267 = vpack.c.b16 %v219, %v218
    %v268 = vpack.c.b16 %v221, %v220
    %v269 = vpack.c.b16 %v223, %v222
    %v270 = vpack.c.b16 %v225, %v224
    %v271 = vpack.c.b16 %v227, %v226
    %v272 = vpack.c.b16 %v229, %v228
    %v273 = vpack.c.b16 %v231, %v230
    %v274 = vpack.c.b16 %v233, %v232
    %v275 = vpack.c.b16 %v235, %v234
    %v276 = vpack.c.b16 %v237, %v236
    %v277 = vpack.c.b16 %v239, %v238
    %v278 = vpack.c.b16 %v241, %v240
    %v279 = vpack.c.b16 %v243, %v242
    %v280 = vpack.c.b16 %v245, %v244
    %v281 = vpack.c.b16 %v247, %v246
    %v282 = vpack.c.b16 %v249, %v248
    %v283 = vpack.c.b16 %v251, %v250
    %v332 = vunpack.c.l.b16 %v101
    %v333 = vunpack.c.l.b16 %v102
    %v334 = vunpack.c.l.b16 %v103
    %v335 = vunpack.c.l.b16 %v104
    %v336 = vunpack.c.l.b16 %v105
    %v337 = vunpack.c.l.b16 %v106
    %v338 = vunpack.c.l.b16 %v107
    %v339 = vunpack.c.l.b16 %v108
    %v340 = vunpack.c.l.b16 %v109
    %v341 = vunpack.c.l.b16 %v110
    %v342 = vunpack.c.l.b16 %v111
    %v343 = vunpack.c.l.b16 %v112
    %v344 = vunpack.c.l.b16 %v113
    %v345 = vunpack.c.l.b16 %v114
    %v346 = vunpack.c.l.b16 %v115
    %v347 = vunpack.c.l.b16 %v116
    %v348 = vpack.c.b16 %v333, %v332
    %v349 = vpack.c.b16 %v335, %v334
    %v350 = vpack.c.b16 %v337, %v336
    %v351 = vpack.c.b16 %v339, %v338
    %v352 = vpack.c.b16 %v341, %v340
    %v353 = vpack.c.b16 %v343, %v342
    %v354 = vpack.c.b16 %v345, %v344
    %v355 = vpack.c.b16 %v347, %v346
    %364 = vmatprep.subr.bf16.mxu0 0
    %365 = vmatpush1.bf16.msra.mxu0 %v348
    %366 = vmatprep.subr.bf16.mxu0 0
    %367 = vmatpush1.bf16.msra.mxu0 %v349
    %368 = vmatprep.subr.bf16.mxu0 0
    %369 = vmatpush1.bf16.msra.mxu0 %v350
    %370 = vmatprep.subr.bf16.mxu0 0
    %371 = vmatpush1.bf16.msra.mxu0 %v351
    %372 = vmatprep.subr.bf16.mxu0 0
    %373 = vmatpush1.bf16.msra.mxu0 %v352
    %374 = vmatprep.subr.bf16.mxu0 0
    %375 = vmatpush1.bf16.msra.mxu0 %v353
    %376 = vmatprep.subr.bf16.mxu0 0
    %377 = vmatpush1.bf16.msra.mxu0 %v354
    %378 = vmatprep.subr.bf16.mxu0 0
    %379 = vmatpush1.bf16.msra.mxu0 %v355
    %380 = vmatprep.subr.bf16.mxu0 0
    %381 = vmatpush1.bf16.msra.mxu0 0
    %382 = vmatprep.subr.bf16.mxu0 0
    %383 = vmatpush1.bf16.msra.mxu0 0
    %384 = vmatprep.subr.bf16.mxu0 0
    %385 = vmatpush1.bf16.msra.mxu0 0
    %386 = vmatprep.subr.bf16.mxu0 0
    %387 = vmatpush1.bf16.msra.mxu0 0
    %388 = vmatprep.subr.bf16.mxu0 0
    %389 = vmatpush1.bf16.msra.mxu0 0
    %390 = vmatprep.subr.bf16.mxu0 0
    %391 = vmatpush1.bf16.msra.mxu0 0
    %392 = vmatprep.subr.bf16.mxu0 0
    %393 = vmatpush1.bf16.msra.mxu0 0
    %394 = vmatprep.subr.bf16.mxu0 0
    %395 = vmatpush1.bf16.msra.mxu0 0
    %396 = vmatprep.mubr.bf16.mxu0 0
    %397 = vmatmul.mubr.bf16.gmra.mrb[0].mxu0 %v252
    %v398 = vpop.f32.mrb[0].mxu0
    %v399 = vadd.f32 %v122, %v398
    %v400 = vpop.f32.mrb[0].mxu0
    %v401 = vpop.f32.mrb[0].mxu0
    %v402 = vadd.f32 %v122, %v401
    %v403 = vpop.f32.mrb[0].mxu0
    %404 = vmatprep.mubr.bf16.mxu0 0
    %405 = vmatmul.mubr.bf16.gmra.mrb[0].mxu0 %v253
    %v406 = vpop.f32.mrb[0].mxu0
    %v407 = vadd.f32 %v122, %v406
    %v408 = vpop.f32.mrb[0].mxu0
    %v409 = vpop.f32.mrb[0].mxu0
    %v410 = vadd.f32 %v122, %v409
    %v411 = vpop.f32.mrb[0].mxu0
    %412 = vmatprep.mubr.bf16.mxu0 0
    %413 = vmatmul.mubr.bf16.gmra.mrb[0].mxu0 %v254
    %v414 = vpop.f32.mrb[0].mxu0
    %v415 = vadd.f32 %v122, %v414
    %v416 = vpop.f32.mrb[0].mxu0
    %v417 = vpop.f32.mrb[0].mxu0
    %v418 = vadd.f32 %v122, %v417
    %v419 = vpop.f32.mrb[0].mxu0
    %420 = vmatprep.mubr.bf16.mxu0 0
    %421 = vmatmul.mubr.bf16.gmra.mrb[0].mxu0 %v255
    %v422 = vpop.f32.mrb[0].mxu0
    %v423 = vadd.f32 %v122, %v422
    %v424 = vpop.f32.mrb[0].mxu0
    %v425 = vpop.f32.mrb[0].mxu0
    %v426 = vadd.f32 %v122, %v425
    %v427 = vpop.f32.mrb[0].mxu0
    %428 = vmatprep.mubr.bf16.mxu0 0
    %429 = vmatmul.mubr.bf16.gmra.mrb[0].mxu0 %v256
    %v430 = vpop.f32.mrb[0].mxu0
    %v431 = vadd.f32 %v122, %v430
    %v432 = vpop.f32.mrb[0].mxu0
    %v433 = vpop.f32.mrb[0].mxu0
    %v434 = vadd.f32 %v122, %v433
    %v435 = vpop.f32.mrb[0].mxu0
    %436 = vmatprep.mubr.bf16.mxu0 0
    %437 = vmatmul.mubr.bf16.gmra.mrb[0].mxu0 %v257
    %v438 = vpop.f32.mrb[0].mxu0
    %v439 = vadd.f32 %v122, %v438
    %v440 = vpop.f32.mrb[0].mxu0
    %v441 = vpop.f32.mrb[0].mxu0
    %v442 = vadd.f32 %v122, %v441
    %v443 = vpop.f32.mrb[0].mxu0
    %444 = vmatprep.mubr.bf16.mxu0 0
    %445 = vmatmul.mubr.bf16.gmra.mrb[0].mxu0 %v258
    %v446 = vpop.f32.mrb[0].mxu0
    %v447 = vadd.f32 %v122, %v446
    %v448 = vpop.f32.mrb[0].mxu0
    %v449 = vpop.f32.mrb[0].mxu0
    %v450 = vadd.f32 %v122, %v449
    %v451 = vpop.f32.mrb[0].mxu0
    %452 = vmatprep.mubr.bf16.mxu0 0
    %453 = vmatmul.mubr.bf16.gmra.mrb[0].mxu0 %v259
    %v454 = vpop.f32.mrb[0].mxu0
    %v455 = vadd.f32 %v122, %v454
    %v456 = vpop.f32.mrb[0].mxu0
    %v457 = vpop.f32.mrb[0].mxu0
    %v458 = vadd.f32 %v122, %v457
    %v459 = vpop.f32.mrb[0].mxu0
    %460 = vmatprep.mubr.bf16.mxu0 0
    %461 = vmatmul.mubr.bf16.gmra.mrb[0].mxu0 %v260
    %v462 = vpop.f32.mrb[0].mxu0
    %v463 = vadd.f32 %v122, %v462
    %v464 = vpop.f32.mrb[0].mxu0
    %v465 = vpop.f32.mrb[0].mxu0
    %v466 = vadd.f32 %v122, %v465
    %v467 = vpop.f32.mrb[0].mxu0
    %468 = vmatprep.mubr.bf16.mxu0 0
    %469 = vmatmul.mubr.bf16.gmra.mrb[0].mxu0 %v261
    %v470 = vpop.f32.mrb[0].mxu0
    %v471 = vadd.f32 %v122, %v470
    %v472 = vpop.f32.mrb[0].mxu0
    %v473 = vpop.f32.mrb[0].mxu0
    %v474 = vadd.f32 %v122, %v473
    %v475 = vpop.f32.mrb[0].mxu0
    %476 = vmatprep.mubr.bf16.mxu0 0
    %477 = vmatmul.mubr.bf16.gmra.mrb[0].mxu0 %v262
    %v478 = vpop.f32.mrb[0].mxu0
    %v479 = vadd.f32 %v122, %v478
    %v480 = vpop.f32.mrb[0].mxu0
    %v481 = vpop.f32.mrb[0].mxu0
    %v482 = vadd.f32 %v122, %v481
    %v483 = vpop.f32.mrb[0].mxu0
    %484 = vmatprep.mubr.bf16.mxu0 0
    %485 = vmatmul.mubr.bf16.gmra.mrb[0].mxu0 %v263
    %v486 = vpop.f32.mrb[0].mxu0
    %v487 = vadd.f32 %v122, %v486
    %v488 = vpop.f32.mrb[0].mxu0
    %v489 = vpop.f32.mrb[0].mxu0
    %v490 = vadd.f32 %v122, %v489
    %v491 = vpop.f32.mrb[0].mxu0
    %492 = vmatprep.mubr.bf16.mxu0 0
    %493 = vmatmul.mubr.bf16.gmra.mrb[0].mxu0 %v264
    %v494 = vpop.f32.mrb[0].mxu0
    %v495 = vadd.f32 %v122, %v494
    %v496 = vpop.f32.mrb[0].mxu0
    %v497 = vpop.f32.mrb[0].mxu0
    %v498 = vadd.f32 %v122, %v497
    %v499 = vpop.f32.mrb[0].mxu0
    %500 = vmatprep.mubr.bf16.mxu0 0
    %501 = vmatmul.mubr.bf16.gmra.mrb[0].mxu0 %v265
    %v502 = vpop.f32.mrb[0].mxu0
    %v503 = vadd.f32 %v122, %v502
    %v504 = vpop.f32.mrb[0].mxu0
    %v505 = vpop.f32.mrb[0].mxu0
    %v506 = vadd.f32 %v122, %v505
    %v507 = vpop.f32.mrb[0].mxu0
    %508 = vmatprep.mubr.bf16.mxu0 0
    %509 = vmatmul.mubr.bf16.gmra.mrb[0].mxu0 %v266
    %v510 = vpop.f32.mrb[0].mxu0
    %v511 = vadd.f32 %v122, %v510
    %v512 = vpop.f32.mrb[0].mxu0
    %v513 = vpop.f32.mrb[0].mxu0
    %v514 = vadd.f32 %v122, %v513
    %v515 = vpop.f32.mrb[0].mxu0
    %516 = vmatprep.mubr.bf16.mxu0 0
    %517 = vmatmul.mubr.bf16.gmra.mrb[0].mxu0 %v267
    %v518 = vpop.f32.mrb[0].mxu0
    %v519 = vadd.f32 %v122, %v518
    %v520 = vpop.f32.mrb[0].mxu0
    %v521 = vpop.f32.mrb[0].mxu0
    %v522 = vadd.f32 %v122, %v521
    %v523 = vpop.f32.mrb[0].mxu0
    %524 = vmatprep.mubr.bf16.mxu0 0
    %525 = vmatmul.mubr.bf16.gmra.mrb[0].mxu0 %v268
    %v526 = vpop.f32.mrb[0].mxu0
    %v527 = vadd.f32 %v122, %v526
    %v528 = vpop.f32.mrb[0].mxu0
    %v529 = vpop.f32.mrb[0].mxu0
    %v530 = vadd.f32 %v122, %v529
    %v531 = vpop.f32.mrb[0].mxu0
    %532 = vmatprep.mubr.bf16.mxu0 0
    %533 = vmatmul.mubr.bf16.gmra.mrb[0].mxu0 %v269
    %v534 = vpop.f32.mrb[0].mxu0
    %v535 = vadd.f32 %v122, %v534
    %v536 = vpop.f32.mrb[0].mxu0
    %v537 = vpop.f32.mrb[0].mxu0
    %v538 = vadd.f32 %v122, %v537
    %v539 = vpop.f32.mrb[0].mxu0
    %540 = vmatprep.mubr.bf16.mxu0 0
    %541 = vmatmul.mubr.bf16.gmra.mrb[0].mxu0 %v270
    %v542 = vpop.f32.mrb[0].mxu0
    %v543 = vadd.f32 %v122, %v542
    %v544 = vpop.f32.mrb[0].mxu0
    %v545 = vpop.f32.mrb[0].mxu0
    %v546 = vadd.f32 %v122, %v545
    %v547 = vpop.f32.mrb[0].mxu0
    %548 = vmatprep.mubr.bf16.mxu0 0
    %549 = vmatmul.mubr.bf16.gmra.mrb[0].mxu0 %v271
    %v550 = vpop.f32.mrb[0].mxu0
    %v551 = vadd.f32 %v122, %v550
    %v552 = vpop.f32.mrb[0].mxu0
    %v553 = vpop.f32.mrb[0].mxu0
    %v554 = vadd.f32 %v122, %v553
    %v555 = vpop.f32.mrb[0].mxu0
    %556 = vmatprep.mubr.bf16.mxu0 0
    %557 = vmatmul.mubr.bf16.gmra.mrb[0].mxu0 %v272
    %v558 = vpop.f32.mrb[0].mxu0
    %v559 = vadd.f32 %v122, %v558
    %v560 = vpop.f32.mrb[0].mxu0
    %v561 = vpop.f32.mrb[0].mxu0
    %v562 = vadd.f32 %v122, %v561
    %v563 = vpop.f32.mrb[0].mxu0
    %564 = vmatprep.mubr.bf16.mxu0 0
    %565 = vmatmul.mubr.bf16.gmra.mrb[0].mxu0 %v273
    %v566 = vpop.f32.mrb[0].mxu0
    %v567 = vadd.f32 %v122, %v566
    %v568 = vpop.f32.mrb[0].mxu0
    %v569 = vpop.f32.mrb[0].mxu0
    %v570 = vadd.f32 %v122, %v569
    %v571 = vpop.f32.mrb[0].mxu0
    %572 = vmatprep.mubr.bf16.mxu0 0
    %573 = vmatmul.mubr.bf16.gmra.mrb[0].mxu0 %v274
    %v574 = vpop.f32.mrb[0].mxu0
    %v575 = vadd.f32 %v122, %v574
    %v576 = vpop.f32.mrb[0].mxu0
    %v577 = vpop.f32.mrb[0].mxu0
    %v578 = vadd.f32 %v122, %v577
    %v579 = vpop.f32.mrb[0].mxu0
    %580 = vmatprep.mubr.bf16.mxu0 0
    %581 = vmatmul.mubr.bf16.gmra.mrb[0].mxu0 %v275
    %v582 = vpop.f32.mrb[0].mxu0
    %v583 = vadd.f32 %v122, %v582
    %v584 = vpop.f32.mrb[0].mxu0
    %v585 = vpop.f32.mrb[0].mxu0
    %v586 = vadd.f32 %v122, %v585
    %v587 = vpop.f32.mrb[0].mxu0
    %588 = vmatprep.mubr.bf16.mxu0 0
    %589 = vmatmul.mubr.bf16.gmra.mrb[0].mxu0 %v276
    %v590 = vpop.f32.mrb[0].mxu0
    %v591 = vadd.f32 %v122, %v590
    %v592 = vpop.f32.mrb[0].mxu0
    %v593 = vpop.f32.mrb[0].mxu0
    %v594 = vadd.f32 %v122, %v593
    %v595 = vpop.f32.mrb[0].mxu0
    %596 = vmatprep.mubr.bf16.mxu0 0
    %597 = vmatmul.mubr.bf16.gmra.mrb[0].mxu0 %v277
    %v598 = vpop.f32.mrb[0].mxu0
    %v599 = vadd.f32 %v122, %v598
    %v600 = vpop.f32.mrb[0].mxu0
    %v601 = vpop.f32.mrb[0].mxu0
    %v602 = vadd.f32 %v122, %v601
    %v603 = vpop.f32.mrb[0].mxu0
    %604 = vmatprep.mubr.bf16.mxu0 0
    %605 = vmatmul.mubr.bf16.gmra.mrb[0].mxu0 %v278
    %v606 = vpop.f32.mrb[0].mxu0
    %v607 = vadd.f32 %v122, %v606
    %v608 = vpop.f32.mrb[0].mxu0
    %v609 = vpop.f32.mrb[0].mxu0
    %v610 = vadd.f32 %v122, %v609
    %v611 = vpop.f32.mrb[0].mxu0
    %612 = vmatprep.mubr.bf16.mxu0 0
    %613 = vmatmul.mubr.bf16.gmra.mrb[0].mxu0 %v279
    %v614 = vpop.f32.mrb[0].mxu0
    %v615 = vadd.f32 %v122, %v614
    %v616 = vpop.f32.mrb[0].mxu0
    %v617 = vpop.f32.mrb[0].mxu0
    %v618 = vadd.f32 %v122, %v617
    %v619 = vpop.f32.mrb[0].mxu0
    %620 = vmatprep.mubr.bf16.mxu0 0
    %621 = vmatmul.mubr.bf16.gmra.mrb[0].mxu0 %v280
    %v622 = vpop.f32.mrb[0].mxu0
    %v623 = vadd.f32 %v122, %v622
    %v624 = vpop.f32.mrb[0].mxu0
    %v625 = vpop.f32.mrb[0].mxu0
    %v626 = vadd.f32 %v122, %v625
    %v627 = vpop.f32.mrb[0].mxu0
    %628 = vmatprep.mubr.bf16.mxu0 0
    %629 = vmatmul.mubr.bf16.gmra.mrb[0].mxu0 %v281
    %v630 = vpop.f32.mrb[0].mxu0
    %v631 = vadd.f32 %v122, %v630
    %v632 = vpop.f32.mrb[0].mxu0
    %v633 = vpop.f32.mrb[0].mxu0
    %v634 = vadd.f32 %v122, %v633
    %v635 = vpop.f32.mrb[0].mxu0
    %636 = vmatprep.mubr.bf16.mxu0 0
    %637 = vmatmul.mubr.bf16.gmra.mrb[0].mxu0 %v282
    %v638 = vpop.f32.mrb[0].mxu0
    %v639 = vadd.f32 %v122, %v638
    %v640 = vpop.f32.mrb[0].mxu0
    %v641 = vpop.f32.mrb[0].mxu0
    %v642 = vadd.f32 %v122, %v641
    %v643 = vpop.f32.mrb[0].mxu0
    %644 = vmatprep.mubr.bf16.mxu0 0
    %645 = vmatmul.mubr.bf16.gmra.mrb[0].mxu0 %v283
    %v646 = vpop.f32.mrb[0].mxu0
    %v647 = vadd.f32 %v122, %v646
    %v648 = vpop.f32.mrb[0].mxu0
    %v649 = vpop.f32.mrb[0].mxu0
    %v650 = vadd.f32 %v122, %v649
    %v651 = vpop.f32.mrb[0].mxu0
    %652 = vdwg.mxu0
    %v653 = vmax.f32 %v399, 0.0
    %v654 = vmax.f32 %v402, 0.0
    %v655 = vmax.f32 %v407, 0.0
    %v656 = vmax.f32 %v410, 0.0
    %v657 = vmax.f32 %v415, 0.0
    %v658 = vmax.f32 %v418, 0.0
    %v659 = vmax.f32 %v423, 0.0
    %v660 = vmax.f32 %v426, 0.0
    %v661 = vmax.f32 %v431, 0.0
    %v662 = vmax.f32 %v434, 0.0
    %v663 = vmax.f32 %v439, 0.0
    %v664 = vmax.f32 %v442, 0.0
    %v665 = vmax.f32 %v447, 0.0
    %v666 = vmax.f32 %v450, 0.0
    %v667 = vmax.f32 %v455, 0.0
    %v668 = vmax.f32 %v458, 0.0
    %v669 = vmax.f32 %v463, 0.0
    %v670 = vmax.f32 %v466, 0.0
    %v671 = vmax.f32 %v471, 0.0
    %v672 = vmax.f32 %v474, 0.0
    %v673 = vmax.f32 %v479, 0.0
    %v674 = vmax.f32 %v482, 0.0
    %v675 = vmax.f32 %v487, 0.0
    %v676 = vmax.f32 %v490, 0.0
    %v677 = vmax.f32 %v495, 0.0
    %v678 = vmax.f32 %v498, 0.0
    %v679 = vmax.f32 %v503, 0.0
    %v680 = vmax.f32 %v506, 0.0
    %v681 = vmax.f32 %v511, 0.0
    %v682 = vmax.f32 %v514, 0.0
    %v683 = vmax.f32 %v519, 0.0
    %v684 = vmax.f32 %v522, 0.0
    %v685 = vmax.f32 %v527, 0.0
    %v686 = vmax.f32 %v530, 0.0
    %v687 = vmax.f32 %v535, 0.0
    %v688 = vmax.f32 %v538, 0.0
    %v689 = vmax.f32 %v543, 0.0
    %v690 = vmax.f32 %v546, 0.0
    %v691 = vmax.f32 %v551, 0.0
    %v692 = vmax.f32 %v554, 0.0
    %v693 = vmax.f32 %v559, 0.0
    %v694 = vmax.f32 %v562, 0.0
    %v695 = vmax.f32 %v567, 0.0
    %v696 = vmax.f32 %v570, 0.0
    %v697 = vmax.f32 %v575, 0.0
    %v698 = vmax.f32 %v578, 0.0
    %v699 = vmax.f32 %v583, 0.0
    %v700 = vmax.f32 %v586, 0.0
    %v701 = vmax.f32 %v591, 0.0
    %v702 = vmax.f32 %v594, 0.0
    %v703 = vmax.f32 %v599, 0.0
    %v704 = vmax.f32 %v602, 0.0
    %v705 = vmax.f32 %v607, 0.0
    %v706 = vmax.f32 %v610, 0.0
    %v707 = vmax.f32 %v615, 0.0
    %v708 = vmax.f32 %v618, 0.0
    %v709 = vmax.f32 %v623, 0.0
    %v710 = vmax.f32 %v626, 0.0
    %v711 = vmax.f32 %v631, 0.0
    %v712 = vmax.f32 %v634, 0.0
    %v713 = vmax.f32 %v639, 0.0
    %v714 = vmax.f32 %v642, 0.0
    %v715 = vmax.f32 %v647, 0.0
    %v716 = vmax.f32 %v650, 0.0
    %v717 = vld [vmem:[%s3] sm:$0xf]
    %v718 = vpack.c.bf16 %v654, %v653
    %v719 = vpack.c.bf16 %v656, %v655
    %v720 = vpack.c.bf16 %v658, %v657
    %v721 = vpack.c.bf16 %v660, %v659
    %v722 = vpack.c.bf16 %v662, %v661
    %v723 = vpack.c.bf16 %v664, %v663
    %v724 = vpack.c.bf16 %v666, %v665
    %v725 = vpack.c.bf16 %v668, %v667
    %v726 = vpack.c.bf16 %v670, %v669
    %v727 = vpack.c.bf16 %v672, %v671
    %v728 = vpack.c.bf16 %v674, %v673
    %v729 = vpack.c.bf16 %v676, %v675
    %v730 = vpack.c.bf16 %v678, %v677
    %v731 = vpack.c.bf16 %v680, %v679
    %v732 = vpack.c.bf16 %v682, %v681
    %v733 = vpack.c.bf16 %v684, %v683
    %v734 = vpack.c.bf16 %v686, %v685
    %v735 = vpack.c.bf16 %v688, %v687
    %v736 = vpack.c.bf16 %v690, %v689
    %v737 = vpack.c.bf16 %v692, %v691
    %v738 = vpack.c.bf16 %v694, %v693
    %v739 = vpack.c.bf16 %v696, %v695
    %v740 = vpack.c.bf16 %v698, %v697
    %v741 = vpack.c.bf16 %v700, %v699
    %v742 = vpack.c.bf16 %v702, %v701
    %v743 = vpack.c.bf16 %v704, %v703
    %v744 = vpack.c.bf16 %v706, %v705
    %v745 = vpack.c.bf16 %v708, %v707
    %v746 = vpack.c.bf16 %v710, %v709
    %v747 = vpack.c.bf16 %v712, %v711
    %v748 = vpack.c.bf16 %v714, %v713
    %v749 = vpack.c.bf16 %v716, %v715
    %v752 = vunpack.c.l.s4 1966171168
    %v753 = vunpack.c.0.s8 %v752
    %v754 = vlaneseq
    %v755 = vshrl.u32 %v754, 7
    %v756 = vsub.s32 %v753, %v755
    %v757 = vrot.slane %v717, %v756
    %v758 = vcombine.high %v757, %v757
    %v760 = vunpack.c.l.s4 1966171168
    %v761 = vunpack.c.0.s8 %v760
    %v762 = vlaneseq
    %v763 = vshrl.u32 %v762, 7
    %v764 = vsub.s32 %v761, %v763
    %v765 = vrot.slane %v757, %v764
    %v767 = vunpack.c.l.s4 1966171168
    %v768 = vunpack.c.0.s8 %v767
    %v769 = vlaneseq
    %v770 = vshrl.u32 %v769, 7
    %v771 = vsub.s32 %v768, %v770
    %v772 = vrot.slane %v758, %v771
    %v773 = vcombine.high %v765, %v765
    %v774 = vcombine.high %v772, %v772
    %779 = vmatprep.subr.bf16.mxu0 0
    %780 = vmatpush1.bf16.msra.mxu0 %v718
    %781 = vmatprep.subr.bf16.mxu0 0
    %782 = vmatpush1.bf16.msra.mxu0 %v719
    %783 = vmatprep.subr.bf16.mxu0 0
    %784 = vmatpush1.bf16.msra.mxu0 %v720
    %785 = vmatprep.subr.bf16.mxu0 0
    %786 = vmatpush1.bf16.msra.mxu0 %v721
    %787 = vmatprep.subr.bf16.mxu0 0
    %788 = vmatpush1.bf16.msra.mxu0 %v722
    %789 = vmatprep.subr.bf16.mxu0 0
    %790 = vmatpush1.bf16.msra.mxu0 %v723
    %791 = vmatprep.subr.bf16.mxu0 0
    %792 = vmatpush1.bf16.msra.mxu0 %v724
    %793 = vmatprep.subr.bf16.mxu0 0
    %794 = vmatpush1.bf16.msra.mxu0 %v725
    %795 = vmatprep.subr.bf16.mxu0 0
    %796 = vmatpush1.bf16.msra.mxu0 %v726
    %797 = vmatprep.subr.bf16.mxu0 0
    %798 = vmatpush1.bf16.msra.mxu0 %v727
    %799 = vmatprep.subr.bf16.mxu0 0
    %800 = vmatpush1.bf16.msra.mxu0 %v728
    %801 = vmatprep.subr.bf16.mxu0 0
    %802 = vmatpush1.bf16.msra.mxu0 %v729
    %803 = vmatprep.subr.bf16.mxu0 0
    %804 = vmatpush1.bf16.msra.mxu0 %v730
    %805 = vmatprep.subr.bf16.mxu0 0
    %806 = vmatpush1.bf16.msra.mxu0 %v731
    %807 = vmatprep.subr.bf16.mxu0 0
    %808 = vmatpush1.bf16.msra.mxu0 %v732
    %809 = vmatprep.subr.bf16.mxu0 0
    %810 = vmatpush1.bf16.msra.mxu0 %v733
    %811 = vmatprep.mubr.bf16.mxu0 %v772
    %812 = vmatmul.mubr.bf16.gmra.mrb[0].mxu0 %v765
    %v813 = vpop.f32.mrb[0].mxu0
    %v814 = vadd.f32 0.0, %v813
    %v815 = vpop.f32.mrb[0].mxu0
    %v816 = vpop.f32.mrb[0].mxu0
    %v817 = vpop.f32.mrb[0].mxu0
    %818 = vdwg.mxu0
    %819 = vmatprep.subr.bf16.mxu0 0
    %820 = vmatpush1.bf16.msra.mxu0 %v734
    %821 = vmatprep.subr.bf16.mxu0 0
    %822 = vmatpush1.bf16.msra.mxu0 %v735
    %823 = vmatprep.subr.bf16.mxu0 0
    %824 = vmatpush1.bf16.msra.mxu0 %v736
    %825 = vmatprep.subr.bf16.mxu0 0
    %826 = vmatpush1.bf16.msra.mxu0 %v737
    %827 = vmatprep.subr.bf16.mxu0 0
    %828 = vmatpush1.bf16.msra.mxu0 %v738
    %829 = vmatprep.subr.bf16.mxu0 0
    %830 = vmatpush1.bf16.msra.mxu0 %v739
    %831 = vmatprep.subr.bf16.mxu0 0
    %832 = vmatpush1.bf16.msra.mxu0 %v740
    %833 = vmatprep.subr.bf16.mxu0 0
    %834 = vmatpush1.bf16.msra.mxu0 %v741
    %835 = vmatprep.subr.bf16.mxu0 0
    %836 = vmatpush1.bf16.msra.mxu0 %v742
    %837 = vmatprep.subr.bf16.mxu0 0
    %838 = vmatpush1.bf16.msra.mxu0 %v743
    %839 = vmatprep.subr.bf16.mxu0 0
    %840 = vmatpush1.bf16.msra.mxu0 %v744
    %841 = vmatprep.subr.bf16.mxu0 0
    %842 = vmatpush1.bf16.msra.mxu0 %v745
    %843 = vmatprep.subr.bf16.mxu0 0
    %844 = vmatpush1.bf16.msra.mxu0 %v746
    %845 = vmatprep.subr.bf16.mxu0 0
    %846 = vmatpush1.bf16.msra.mxu0 %v747
    %847 = vmatprep.subr.bf16.mxu0 0
    %848 = vmatpush1.bf16.msra.mxu0 %v748
    %849 = vmatprep.subr.bf16.mxu0 0
    %850 = vmatpush1.bf16.msra.mxu0 %v749
    %851 = vmatprep.mubr.bf16.mxu0 %v774
    %852 = vmatmul.mubr.bf16.gmra.mrb[0].mxu0 %v773
    %v853 = vpop.f32.mrb[0].mxu0
    %v854 = vadd.f32 %v814, %v853
    %v855 = vpop.f32.mrb[0].mxu0
    %v856 = vpop.f32.mrb[0].mxu0
    %v857 = vpop.f32.mrb[0].mxu0
    %858 = vdwg.mxu0
    %v859 = vpack.c.bf16 %v854, %v854
    %v860 = vld [vmem:[%s4] sm:$0xff]
    %v861 = vld [vmem:[%s4 + $0x8] sm:$0xff]
    %v862 = vld [vmem:[%s4 + $0x10] sm:$0xff]
    %v863 = vld [vmem:[%s4 + $0x18] sm:$0xff]
    %v864 = vld [vmem:[%s4 + $0x20] sm:$0xff]
    %v865 = vld [vmem:[%s4 + $0x28] sm:$0xff]
    %v866 = vld [vmem:[%s4 + $0x30] sm:$0xff]
    %v867 = vld [vmem:[%s4 + $0x38] sm:$0xff]
    %v868 = vld [vmem:[%s4 + $0x40] sm:$0xff]
    %v869 = vld [vmem:[%s4 + $0x48] sm:$0xff]
    %v870 = vld [vmem:[%s4 + $0x50] sm:$0xff]
    %v871 = vld [vmem:[%s4 + $0x58] sm:$0xff]
    %v872 = vld [vmem:[%s4 + $0x60] sm:$0xff]
    %v873 = vld [vmem:[%s4 + $0x68] sm:$0xff]
    %v874 = vld [vmem:[%s4 + $0x70] sm:$0xff]
    %v875 = vld [vmem:[%s4 + $0x78] sm:$0xff]
    %v876 = vld [vmem:[%s4 + $0x80] sm:$0xff]
    %v877 = vld [vmem:[%s4 + $0x88] sm:$0xff]
    %v878 = vld [vmem:[%s4 + $0x90] sm:$0xff]
    %v879 = vld [vmem:[%s4 + $0x98] sm:$0xff]
    %v880 = vld [vmem:[%s4 + $0xa0] sm:$0xff]
    %v881 = vld [vmem:[%s4 + $0xa8] sm:$0xff]
    %v882 = vld [vmem:[%s4 + $0xb0] sm:$0xff]
    %v883 = vld [vmem:[%s4 + $0xb8] sm:$0xff]
    %v884 = vld [vmem:[%s4 + $0xc0] sm:$0xff]
    %v885 = vld [vmem:[%s4 + $0xc8] sm:$0xff]
    %v886 = vld [vmem:[%s4 + $0xd0] sm:$0xff]
    %v887 = vld [vmem:[%s4 + $0xd8] sm:$0xff]
    %v888 = vld [vmem:[%s4 + $0xe0] sm:$0xff]
    %v889 = vld [vmem:[%s4 + $0xe8] sm:$0xff]
    %v890 = vld [vmem:[%s4 + $0xf0] sm:$0xff]
    %v891 = vld [vmem:[%s4 + $0xf8] sm:$0xff]
    %v892 = vld [vmem:[%s4 + $0x100] sm:$0xff]
    %v893 = vld [vmem:[%s4 + $0x108] sm:$0xff]
    %v894 = vld [vmem:[%s4 + $0x110] sm:$0xff]
    %v895 = vld [vmem:[%s4 + $0x118] sm:$0xff]
    %v896 = vld [vmem:[%s4 + $0x120] sm:$0xff]
    %v897 = vld [vmem:[%s4 + $0x128] sm:$0xff]
    %v898 = vld [vmem:[%s4 + $0x130] sm:$0xff]
    %v899 = vld [vmem:[%s4 + $0x138] sm:$0xff]
    %v900 = vld [vmem:[%s4 + $0x140] sm:$0xff]
    %v901 = vld [vmem:[%s4 + $0x148] sm:$0xff]
    %v902 = vld [vmem:[%s4 + $0x150] sm:$0xff]
    %v903 = vld [vmem:[%s4 + $0x158] sm:$0xff]
    %v904 = vld [vmem:[%s4 + $0x160] sm:$0xff]
    %v905 = vld [vmem:[%s4 + $0x168] sm:$0xff]
    %v906 = vld [vmem:[%s4 + $0x170] sm:$0xff]
    %v907 = vld [vmem:[%s4 + $0x178] sm:$0xff]
    %v908 = vld [vmem:[%s4 + $0x180] sm:$0xff]
    %v909 = vld [vmem:[%s4 + $0x188] sm:$0xff]
    %v910 = vld [vmem:[%s4 + $0x190] sm:$0xff]
    %v911 = vld [vmem:[%s4 + $0x198] sm:$0xff]
    %v912 = vld [vmem:[%s4 + $0x1a0] sm:$0xff]
    %v913 = vld [vmem:[%s4 + $0x1a8] sm:$0xff]
    %v914 = vld [vmem:[%s4 + $0x1b0] sm:$0xff]
    %v915 = vld [vmem:[%s4 + $0x1b8] sm:$0xff]
    %v916 = vld [vmem:[%s4 + $0x1c0] sm:$0xff]
    %v917 = vld [vmem:[%s4 + $0x1c8] sm:$0xff]
    %v918 = vld [vmem:[%s4 + $0x1d0] sm:$0xff]
    %v919 = vld [vmem:[%s4 + $0x1d8] sm:$0xff]
    %v920 = vld [vmem:[%s4 + $0x1e0] sm:$0xff]
    %v921 = vld [vmem:[%s4 + $0x1e8] sm:$0xff]
    %v922 = vld [vmem:[%s4 + $0x1f0] sm:$0xff]
    %v923 = vld [vmem:[%s4 + $0x1f8] sm:$0xff]
    %v924 = vld [vmem:[%s5] sm:$0xff]
    %v926 = vlaneseq
    %v927 = vshrl.u32 %v926, 7
    %v928 = vsub.s32 0, %v927
    %v929 = vrot.slane %v924, %v928
    %v930 = vlaneseq
    %v931 = vshrl.u32 %v930, 7
    %v932 = vsub.s32 1, %v931
    %v933 = vrot.slane %v924, %v932
    %v934 = vlaneseq
    %v935 = vshrl.u32 %v934, 7
    %v936 = vsub.s32 2, %v935
    %v937 = vrot.slane %v924, %v936
    %v938 = vlaneseq
    %v939 = vshrl.u32 %v938, 7
    %v940 = vsub.s32 3, %v939
    %v941 = vrot.slane %v924, %v940
    %v942 = vlaneseq
    %v943 = vshrl.u32 %v942, 7
    %v944 = vsub.s32 4, %v943
    %v945 = vrot.slane %v924, %v944
    %v946 = vlaneseq
    %v947 = vshrl.u32 %v946, 7
    %v948 = vsub.s32 5, %v947
    %v949 = vrot.slane %v924, %v948
    %v950 = vlaneseq
    %v951 = vshrl.u32 %v950, 7
    %v952 = vsub.s32 6, %v951
    %v953 = vrot.slane %v924, %v952
    %v954 = vlaneseq
    %v955 = vshrl.u32 %v954, 7
    %v956 = vsub.s32 7, %v955
    %v957 = vrot.slane %v924, %v956
    %v1030 = vunpack.c.l.b16 %v860
    %v1031 = vunpack.c.h.b16 %v860
    %v1032 = vunpack.c.l.b16 %v861
    %v1033 = vunpack.c.h.b16 %v861
    %v1034 = vunpack.c.l.b16 %v862
    %v1035 = vunpack.c.h.b16 %v862
    %v1036 = vunpack.c.l.b16 %v863
    %v1037 = vunpack.c.h.b16 %v863
    %v1038 = vunpack.c.l.b16 %v864
    %v1039 = vunpack.c.h.b16 %v864
    %v1040 = vunpack.c.l.b16 %v865
    %v1041 = vunpack.c.h.b16 %v865
    %v1042 = vunpack.c.l.b16 %v866
    %v1043 = vunpack.c.h.b16 %v866
    %v1044 = vunpack.c.l.b16 %v867
    %v1045 = vunpack.c.h.b16 %v867
    %v1046 = vunpack.c.l.b16 %v868
    %v1047 = vunpack.c.h.b16 %v868
    %v1048 = vunpack.c.l.b16 %v869
    %v1049 = vunpack.c.h.b16 %v869
    %v1050 = vunpack.c.l.b16 %v870
    %v1051 = vunpack.c.h.b16 %v870
    %v1052 = vunpack.c.l.b16 %v871
    %v1053 = vunpack.c.h.b16 %v871
    %v1054 = vunpack.c.l.b16 %v872
    %v1055 = vunpack.c.h.b16 %v872
    %v1056 = vunpack.c.l.b16 %v873
    %v1057 = vunpack.c.h.b16 %v873
    %v1058 = vunpack.c.l.b16 %v874
    %v1059 = vunpack.c.h.b16 %v874
    %v1060 = vunpack.c.l.b16 %v875
    %v1061 = vunpack.c.h.b16 %v875
    %v1062 = vunpack.c.l.b16 %v876
    %v1063 = vunpack.c.h.b16 %v876
    %v1064 = vunpack.c.l.b16 %v877
    %v1065 = vunpack.c.h.b16 %v877
    %v1066 = vunpack.c.l.b16 %v878
    %v1067 = vunpack.c.h.b16 %v878
    %v1068 = vunpack.c.l.b16 %v879
    %v1069 = vunpack.c.h.b16 %v879
    %v1070 = vunpack.c.l.b16 %v880
    %v1071 = vunpack.c.h.b16 %v880
    %v1072 = vunpack.c.l.b16 %v881
    %v1073 = vunpack.c.h.b16 %v881
    %v1074 = vunpack.c.l.b16 %v882
    %v1075 = vunpack.c.h.b16 %v882
    %v1076 = vunpack.c.l.b16 %v883
    %v1077 = vunpack.c.h.b16 %v883
    %v1078 = vunpack.c.l.b16 %v884
    %v1079 = vunpack.c.h.b16 %v884
    %v1080 = vunpack.c.l.b16 %v885
    %v1081 = vunpack.c.h.b16 %v885
    %v1082 = vunpack.c.l.b16 %v886
    %v1083 = vunpack.c.h.b16 %v886
    %v1084 = vunpack.c.l.b16 %v887
    %v1085 = vunpack.c.h.b16 %v887
    %v1086 = vunpack.c.l.b16 %v888
    %v1087 = vunpack.c.h.b16 %v888
    %v1088 = vunpack.c.l.b16 %v889
    %v1089 = vunpack.c.h.b16 %v889
    %v1090 = vunpack.c.l.b16 %v890
    %v1091 = vunpack.c.h.b16 %v890
    %v1092 = vunpack.c.l.b16 %v891
    %v1093 = vunpack.c.h.b16 %v891
    %v1094 = vunpack.c.l.b16 %v892
    %v1095 = vunpack.c.h.b16 %v892
    %v1096 = vunpack.c.l.b16 %v893
    %v1097 = vunpack.c.h.b16 %v893
    %v1098 = vunpack.c.l.b16 %v894
    %v1099 = vunpack.c.h.b16 %v894
    %v1100 = vunpack.c.l.b16 %v895
    %v1101 = vunpack.c.h.b16 %v895
    %v1102 = vunpack.c.l.b16 %v896
    %v1103 = vunpack.c.h.b16 %v896
    %v1104 = vunpack.c.l.b16 %v897
    %v1105 = vunpack.c.h.b16 %v897
    %v1106 = vunpack.c.l.b16 %v898
    %v1107 = vunpack.c.h.b16 %v898
    %v1108 = vunpack.c.l.b16 %v899
    %v1109 = vunpack.c.h.b16 %v899
    %v1110 = vunpack.c.l.b16 %v900
    %v1111 = vunpack.c.h.b16 %v900
    %v1112 = vunpack.c.l.b16 %v901
    %v1113 = vunpack.c.h.b16 %v901
    %v1114 = vunpack.c.l.b16 %v902
    %v1115 = vunpack.c.h.b16 %v902
    %v1116 = vunpack.c.l.b16 %v903
    %v1117 = vunpack.c.h.b16 %v903
    %v1118 = vunpack.c.l.b16 %v904
    %v1119 = vunpack.c.h.b16 %v904
    %v1120 = vunpack.c.l.b16 %v905
    %v1121 = vunpack.c.h.b16 %v905
    %v1122 = vunpack.c.l.b16 %v906
    %v1123 = vunpack.c.h.b16 %v906
    %v1124 = vunpack.c.l.b16 %v907
    %v1125 = vunpack.c.h.b16 %v907
    %v1126 = vunpack.c.l.b16 %v908
    %v1127 = vunpack.c.h.b16 %v908
    %v1128 = vunpack.c.l.b16 %v909
    %v1129 = vunpack.c.h.b16 %v909
    %v1130 = vunpack.c.l.b16 %v910
    %v1131 = vunpack.c.h.b16 %v910
    %v1132 = vunpack.c.l.b16 %v911
    %v1133 = vunpack.c.h.b16 %v911
    %v1134 = vunpack.c.l.b16 %v912
    %v1135 = vunpack.c.h.b16 %v912
    %v1136 = vunpack.c.l.b16 %v913
    %v1137 = vunpack.c.h.b16 %v913
    %v1138 = vunpack.c.l.b16 %v914
    %v1139 = vunpack.c.h.b16 %v914
    %v1140 = vunpack.c.l.b16 %v915
    %v1141 = vunpack.c.h.b16 %v915
    %v1142 = vunpack.c.l.b16 %v916
    %v1143 = vunpack.c.h.b16 %v916
    %v1144 = vunpack.c.l.b16 %v917
    %v1145 = vunpack.c.h.b16 %v917
    %v1146 = vunpack.c.l.b16 %v918
    %v1147 = vunpack.c.h.b16 %v918
    %v1148 = vunpack.c.l.b16 %v919
    %v1149 = vunpack.c.h.b16 %v919
    %v1150 = vunpack.c.l.b16 %v920
    %v1151 = vunpack.c.h.b16 %v920
    %v1152 = vunpack.c.l.b16 %v921
    %v1153 = vunpack.c.h.b16 %v921
    %v1154 = vunpack.c.l.b16 %v922
    %v1155 = vunpack.c.h.b16 %v922
    %v1156 = vunpack.c.l.b16 %v923
    %v1157 = vunpack.c.h.b16 %v923
    %v1158 = vpack.c.b16 %v1038, %v1030
    %v1159 = vpack.c.b16 %v1039, %v1031
    %v1160 = vpack.c.b16 %v1040, %v1032
    %v1161 = vpack.c.b16 %v1041, %v1033
    %v1162 = vpack.c.b16 %v1042, %v1034
    %v1163 = vpack.c.b16 %v1043, %v1035
    %v1164 = vpack.c.b16 %v1044, %v1036
    %v1165 = vpack.c.b16 %v1045, %v1037
    %v1166 = vpack.c.b16 %v1054, %v1046
    %v1167 = vpack.c.b16 %v1055, %v1047
    %v1168 = vpack.c.b16 %v1056, %v1048
    %v1169 = vpack.c.b16 %v1057, %v1049
    %v1170 = vpack.c.b16 %v1058, %v1050
    %v1171 = vpack.c.b16 %v1059, %v1051
    %v1172 = vpack.c.b16 %v1060, %v1052
    %v1173 = vpack.c.b16 %v1061, %v1053
    %v1174 = vpack.c.b16 %v1070, %v1062
    %v1175 = vpack.c.b16 %v1071, %v1063
    %v1176 = vpack.c.b16 %v1072, %v1064
    %v1177 = vpack.c.b16 %v1073, %v1065
    %v1178 = vpack.c.b16 %v1074, %v1066
    %v1179 = vpack.c.b16 %v1075, %v1067
    %v1180 = vpack.c.b16 %v1076, %v1068
    %v1181 = vpack.c.b16 %v1077, %v1069
    %v1182 = vpack.c.b16 %v1086, %v1078
    %v1183 = vpack.c.b16 %v1087, %v1079
    %v1184 = vpack.c.b16 %v1088, %v1080
    %v1185 = vpack.c.b16 %v1089, %v1081
    %v1186 = vpack.c.b16 %v1090, %v1082
    %v1187 = vpack.c.b16 %v1091, %v1083
    %v1188 = vpack.c.b16 %v1092, %v1084
    %v1189 = vpack.c.b16 %v1093, %v1085
    %v1190 = vpack.c.b16 %v1102, %v1094
    %v1191 = vpack.c.b16 %v1103, %v1095
    %v1192 = vpack.c.b16 %v1104, %v1096
    %v1193 = vpack.c.b16 %v1105, %v1097
    %v1194 = vpack.c.b16 %v1106, %v1098
    %v1195 = vpack.c.b16 %v1107, %v1099
    %v1196 = vpack.c.b16 %v1108, %v1100
    %v1197 = vpack.c.b16 %v1109, %v1101
    %v1198 = vpack.c.b16 %v1118, %v1110
    %v1199 = vpack.c.b16 %v1119, %v1111
    %v1200 = vpack.c.b16 %v1120, %v1112
    %v1201 = vpack.c.b16 %v1121, %v1113
    %v1202 = vpack.c.b16 %v1122, %v1114
    %v1203 = vpack.c.b16 %v1123, %v1115
    %v1204 = vpack.c.b16 %v1124, %v1116
    %v1205 = vpack.c.b16 %v1125, %v1117
    %v1206 = vpack.c.b16 %v1134, %v1126
    %v1207 = vpack.c.b16 %v1135, %v1127
    %v1208 = vpack.c.b16 %v1136, %v1128
    %v1209 = vpack.c.b16 %v1137, %v1129
    %v1210 = vpack.c.b16 %v1138, %v1130
    %v1211 = vpack.c.b16 %v1139, %v1131
    %v1212 = vpack.c.b16 %v1140, %v1132
    %v1213 = vpack.c.b16 %v1141, %v1133
    %v1214 = vpack.c.b16 %v1150, %v1142
    %v1215 = vpack.c.b16 %v1151, %v1143
    %v1216 = vpack.c.b16 %v1152, %v1144
    %v1217 = vpack.c.b16 %v1153, %v1145
    %v1218 = vpack.c.b16 %v1154, %v1146
    %v1219 = vpack.c.b16 %v1155, %v1147
    %v1220 = vpack.c.b16 %v1156, %v1148
    %v1221 = vpack.c.b16 %v1157, %v1149
    %1286 = vmatprep.subr.bf16.mxu0 %v1159
    %1287 = vmatpush1.bf16.msra.mxu0 %v1158
    %1288 = vmatprep.subr.bf16.mxu0 %v1167
    %1289 = vmatpush1.bf16.msra.mxu0 %v1166
    %1290 = vmatprep.subr.bf16.mxu0 %v1175
    %1291 = vmatpush1.bf16.msra.mxu0 %v1174
    %1292 = vmatprep.subr.bf16.mxu0 %v1183
    %1293 = vmatpush1.bf16.msra.mxu0 %v1182
    %1294 = vmatprep.subr.bf16.mxu0 %v1191
    %1295 = vmatpush1.bf16.msra.mxu0 %v1190
    %1296 = vmatprep.subr.bf16.mxu0 %v1199
    %1297 = vmatpush1.bf16.msra.mxu0 %v1198
    %1298 = vmatprep.subr.bf16.mxu0 %v1207
    %1299 = vmatpush1.bf16.msra.mxu0 %v1206
    %1300 = vmatprep.subr.bf16.mxu0 %v1215
    %1301 = vmatpush1.bf16.msra.mxu0 %v1214
    %1302 = vmatprep.subr.bf16.mxu0 0
    %1303 = vmatpush1.bf16.msra.mxu0 0
    %1304 = vmatprep.subr.bf16.mxu0 0
    %1305 = vmatpush1.bf16.msra.mxu0 0
    %1306 = vmatprep.subr.bf16.mxu0 0
    %1307 = vmatpush1.bf16.msra.mxu0 0
    %1308 = vmatprep.subr.bf16.mxu0 0
    %1309 = vmatpush1.bf16.msra.mxu0 0
    %1310 = vmatprep.subr.bf16.mxu0 0
    %1311 = vmatpush1.bf16.msra.mxu0 0
    %1312 = vmatprep.subr.bf16.mxu0 0
    %1313 = vmatpush1.bf16.msra.mxu0 0
    %1314 = vmatprep.subr.bf16.mxu0 0
    %1315 = vmatpush1.bf16.msra.mxu0 0
    %1316 = vmatprep.subr.bf16.mxu0 0
    %1317 = vmatpush1.bf16.msra.mxu0 0
    %1318 = vmatprep.mubr.bf16.mxu0 0
    %1319 = vmatmul.mubr.bf16.gmra.mrb[0].mxu0 %v859
    %v1320 = vpop.f32.mrb[0].mxu0
    %v1321 = vadd.f32 %v929, %v1320
    %v1322 = vpop.f32.mrb[0].mxu0
    %v1323 = vadd.f32 %v933, %v1322
    %v1324 = vpop.f32.mrb[0].mxu0
    %v1325 = vpop.f32.mrb[0].mxu0
    %1326 = vdwg.mxu0
    %1327 = vmatprep.subr.bf16.mxu0 %v1161
    %1328 = vmatpush1.bf16.msra.mxu0 %v1160
    %1329 = vmatprep.subr.bf16.mxu0 %v1169
    %1330 = vmatpush1.bf16.msra.mxu0 %v1168
    %1331 = vmatprep.subr.bf16.mxu0 %v1177
    %1332 = vmatpush1.bf16.msra.mxu0 %v1176
    %1333 = vmatprep.subr.bf16.mxu0 %v1185
    %1334 = vmatpush1.bf16.msra.mxu0 %v1184
    %1335 = vmatprep.subr.bf16.mxu0 %v1193
    %1336 = vmatpush1.bf16.msra.mxu0 %v1192
    %1337 = vmatprep.subr.bf16.mxu0 %v1201
    %1338 = vmatpush1.bf16.msra.mxu0 %v1200
    %1339 = vmatprep.subr.bf16.mxu0 %v1209
    %1340 = vmatpush1.bf16.msra.mxu0 %v1208
    %1341 = vmatprep.subr.bf16.mxu0 %v1217
    %1342 = vmatpush1.bf16.msra.mxu0 %v1216
    %1343 = vmatprep.subr.bf16.mxu0 0
    %1344 = vmatpush1.bf16.msra.mxu0 0
    %1345 = vmatprep.subr.bf16.mxu0 0
    %1346 = vmatpush1.bf16.msra.mxu0 0
    %1347 = vmatprep.subr.bf16.mxu0 0
    %1348 = vmatpush1.bf16.msra.mxu0 0
    %1349 = vmatprep.subr.bf16.mxu0 0
    %1350 = vmatpush1.bf16.msra.mxu0 0
    %1351 = vmatprep.subr.bf16.mxu0 0
    %1352 = vmatpush1.bf16.msra.mxu0 0
    %1353 = vmatprep.subr.bf16.mxu0 0
    %1354 = vmatpush1.bf16.msra.mxu0 0
    %1355 = vmatprep.subr.bf16.mxu0 0
    %1356 = vmatpush1.bf16.msra.mxu0 0
    %1357 = vmatprep.subr.bf16.mxu0 0
    %1358 = vmatpush1.bf16.msra.mxu0 0
    %1359 = vmatprep.mubr.bf16.mxu0 0
    %1360 = vmatmul.mubr.bf16.gmra.mrb[0].mxu0 %v859
    %v1361 = vpop.f32.mrb[0].mxu0
    %v1362 = vadd.f32 %v937, %v1361
    %v1363 = vpop.f32.mrb[0].mxu0
    %v1364 = vadd.f32 %v941, %v1363
    %v1365 = vpop.f32.mrb[0].mxu0
    %v1366 = vpop.f32.mrb[0].mxu0
    %1367 = vdwg.mxu0
    %1368 = vmatprep.subr.bf16.mxu0 %v1163
    %1369 = vmatpush1.bf16.msra.mxu0 %v1162
    %1370 = vmatprep.subr.bf16.mxu0 %v1171
    %1371 = vmatpush1.bf16.msra.mxu0 %v1170
    %1372 = vmatprep.subr.bf16.mxu0 %v1179
    %1373 = vmatpush1.bf16.msra.mxu0 %v1178
    %1374 = vmatprep.subr.bf16.mxu0 %v1187
    %1375 = vmatpush1.bf16.msra.mxu0 %v1186
    %1376 = vmatprep.subr.bf16.mxu0 %v1195
    %1377 = vmatpush1.bf16.msra.mxu0 %v1194
    %1378 = vmatprep.subr.bf16.mxu0 %v1203
    %1379 = vmatpush1.bf16.msra.mxu0 %v1202
    %1380 = vmatprep.subr.bf16.mxu0 %v1211
    %1381 = vmatpush1.bf16.msra.mxu0 %v1210
    %1382 = vmatprep.subr.bf16.mxu0 %v1219
    %1383 = vmatpush1.bf16.msra.mxu0 %v1218
    %1384 = vmatprep.subr.bf16.mxu0 0
    %1385 = vmatpush1.bf16.msra.mxu0 0
    %1386 = vmatprep.subr.bf16.mxu0 0
    %1387 = vmatpush1.bf16.msra.mxu0 0
    %1388 = vmatprep.subr.bf16.mxu0 0
    %1389 = vmatpush1.bf16.msra.mxu0 0
    %1390 = vmatprep.subr.bf16.mxu0 0
    %1391 = vmatpush1.bf16.msra.mxu0 0
    %1392 = vmatprep.subr.bf16.mxu0 0
    %1393 = vmatpush1.bf16.msra.mxu0 0
    %1394 = vmatprep.subr.bf16.mxu0 0
    %1395 = vmatpush1.bf16.msra.mxu0 0
    %1396 = vmatprep.subr.bf16.mxu0 0
    %1397 = vmatpush1.bf16.msra.mxu0 0
    %1398 = vmatprep.subr.bf16.mxu0 0
    %1399 = vmatpush1.bf16.msra.mxu0 0
    %1400 = vmatprep.mubr.bf16.mxu0 0
    %1401 = vmatmul.mubr.bf16.gmra.mrb[0].mxu0 %v859
    %v1402 = vpop.f32.mrb[0].mxu0
    %v1403 = vadd.f32 %v945, %v1402
    %v1404 = vpop.f32.mrb[0].mxu0
    %v1405 = vadd.f32 %v949, %v1404
    %v1406 = vpop.f32.mrb[0].mxu0
    %v1407 = vpop.f32.mrb[0].mxu0
    %1408 = vdwg.mxu0
    %1409 = vmatprep.subr.bf16.mxu0 %v1165
    %1410 = vmatpush1.bf16.msra.mxu0 %v1164
    %1411 = vmatprep.subr.bf16.mxu0 %v1173
    %1412 = vmatpush1.bf16.msra.mxu0 %v1172
    %1413 = vmatprep.subr.bf16.mxu0 %v1181
    %1414 = vmatpush1.bf16.msra.mxu0 %v1180
    %1415 = vmatprep.subr.bf16.mxu0 %v1189
    %1416 = vmatpush1.bf16.msra.mxu0 %v1188
    %1417 = vmatprep.subr.bf16.mxu0 %v1197
    %1418 = vmatpush1.bf16.msra.mxu0 %v1196
    %1419 = vmatprep.subr.bf16.mxu0 %v1205
    %1420 = vmatpush1.bf16.msra.mxu0 %v1204
    %1421 = vmatprep.subr.bf16.mxu0 %v1213
    %1422 = vmatpush1.bf16.msra.mxu0 %v1212
    %1423 = vmatprep.subr.bf16.mxu0 %v1221
    %1424 = vmatpush1.bf16.msra.mxu0 %v1220
    %1425 = vmatprep.subr.bf16.mxu0 0
    %1426 = vmatpush1.bf16.msra.mxu0 0
    %1427 = vmatprep.subr.bf16.mxu0 0
    %1428 = vmatpush1.bf16.msra.mxu0 0
    %1429 = vmatprep.subr.bf16.mxu0 0
    %1430 = vmatpush1.bf16.msra.mxu0 0
    %1431 = vmatprep.subr.bf16.mxu0 0
    %1432 = vmatpush1.bf16.msra.mxu0 0
    %1433 = vmatprep.subr.bf16.mxu0 0
    %1434 = vmatpush1.bf16.msra.mxu0 0
    %1435 = vmatprep.subr.bf16.mxu0 0
    %1436 = vmatpush1.bf16.msra.mxu0 0
    %1437 = vmatprep.subr.bf16.mxu0 0
    %1438 = vmatpush1.bf16.msra.mxu0 0
    %1439 = vmatprep.subr.bf16.mxu0 0
    %1440 = vmatpush1.bf16.msra.mxu0 0
    %1441 = vmatprep.mubr.bf16.mxu0 0
    %1442 = vmatmul.mubr.bf16.gmra.mrb[0].mxu0 %v859
    %v1443 = vpop.f32.mrb[0].mxu0
    %v1444 = vadd.f32 %v953, %v1443
    %v1445 = vpop.f32.mrb[0].mxu0
    %v1446 = vadd.f32 %v957, %v1445
    %v1447 = vpop.f32.mrb[0].mxu0
    %v1448 = vpop.f32.mrb[0].mxu0
    %1449 = vdwg.mxu0
    %v1450 = vpack.c.bf16 %v1321, %v1321
    %v1451 = vpack.c.bf16 %v1323, %v1323
    %v1452 = vpack.c.bf16 %v1362, %v1362
    %v1453 = vpack.c.bf16 %v1364, %v1364
    %v1454 = vpack.c.bf16 %v1403, %v1403
    %v1455 = vpack.c.bf16 %v1405, %v1405
    %v1456 = vpack.c.bf16 %v1444, %v1444
    %v1457 = vpack.c.bf16 %v1446, %v1446
    %v1458 = vld [vmem:[%s6] sm:$0xff]
    %v1459 = vld [vmem:[%s6 + $0x8] sm:$0xff]
    %v1460 = vld [vmem:[%s6 + $0x10] sm:$0xff]
    %v1461 = vld [vmem:[%s6 + $0x18] sm:$0xff]
    %v1462 = vld [vmem:[%s6 + $0x20] sm:$0xff]
    %v1463 = vld [vmem:[%s6 + $0x28] sm:$0xff]
    %v1464 = vld [vmem:[%s6 + $0x30] sm:$0xff]
    %v1465 = vld [vmem:[%s6 + $0x38] sm:$0xff]
    %v1466 = vld [vmem:[%s6 + $0x40] sm:$0xff]
    %v1467 = vld [vmem:[%s6 + $0x48] sm:$0xff]
    %v1468 = vld [vmem:[%s6 + $0x50] sm:$0xff]
    %v1469 = vld [vmem:[%s6 + $0x58] sm:$0xff]
    %v1470 = vld [vmem:[%s6 + $0x60] sm:$0xff]
    %v1471 = vld [vmem:[%s6 + $0x68] sm:$0xff]
    %v1472 = vld [vmem:[%s6 + $0x70] sm:$0xff]
    %v1473 = vld [vmem:[%s6 + $0x78] sm:$0xff]
    %v1474 = vld [vmem:[%s6 + $0x80] sm:$0xff]
    %v1475 = vld [vmem:[%s6 + $0x88] sm:$0xff]
    %v1476 = vld [vmem:[%s6 + $0x90] sm:$0xff]
    %v1477 = vld [vmem:[%s6 + $0x98] sm:$0xff]
    %v1478 = vld [vmem:[%s6 + $0xa0] sm:$0xff]
    %v1479 = vld [vmem:[%s6 + $0xa8] sm:$0xff]
    %v1480 = vld [vmem:[%s6 + $0xb0] sm:$0xff]
    %v1481 = vld [vmem:[%s6 + $0xb8] sm:$0xff]
    %v1482 = vld [vmem:[%s6 + $0xc0] sm:$0xff]
    %v1483 = vld [vmem:[%s6 + $0xc8] sm:$0xff]
    %v1484 = vld [vmem:[%s6 + $0xd0] sm:$0xff]
    %v1485 = vld [vmem:[%s6 + $0xd8] sm:$0xff]
    %v1486 = vld [vmem:[%s6 + $0xe0] sm:$0xff]
    %v1487 = vld [vmem:[%s6 + $0xe8] sm:$0xff]
    %v1488 = vld [vmem:[%s6 + $0xf0] sm:$0xff]
    %v1489 = vld [vmem:[%s6 + $0xf8] sm:$0xff]
    %v1490 = vld [vmem:[%s6 + $0x100] sm:$0xff]
    %v1491 = vld [vmem:[%s6 + $0x108] sm:$0xff]
    %v1492 = vld [vmem:[%s6 + $0x110] sm:$0xff]
    %v1493 = vld [vmem:[%s6 + $0x118] sm:$0xff]
    %v1494 = vld [vmem:[%s6 + $0x120] sm:$0xff]
    %v1495 = vld [vmem:[%s6 + $0x128] sm:$0xff]
    %v1496 = vld [vmem:[%s6 + $0x130] sm:$0xff]
    %v1497 = vld [vmem:[%s6 + $0x138] sm:$0xff]
    %v1498 = vld [vmem:[%s6 + $0x140] sm:$0xff]
    %v1499 = vld [vmem:[%s6 + $0x148] sm:$0xff]
    %v1500 = vld [vmem:[%s6 + $0x150] sm:$0xff]
    %v1501 = vld [vmem:[%s6 + $0x158] sm:$0xff]
    %v1502 = vld [vmem:[%s6 + $0x160] sm:$0xff]
    %v1503 = vld [vmem:[%s6 + $0x168] sm:$0xff]
    %v1504 = vld [vmem:[%s6 + $0x170] sm:$0xff]
    %v1505 = vld [vmem:[%s6 + $0x178] sm:$0xff]
    %v1506 = vld [vmem:[%s6 + $0x180] sm:$0xff]
    %v1507 = vld [vmem:[%s6 + $0x188] sm:$0xff]
    %v1508 = vld [vmem:[%s6 + $0x190] sm:$0xff]
    %v1509 = vld [vmem:[%s6 + $0x198] sm:$0xff]
    %v1510 = vld [vmem:[%s6 + $0x1a0] sm:$0xff]
    %v1511 = vld [vmem:[%s6 + $0x1a8] sm:$0xff]
    %v1512 = vld [vmem:[%s6 + $0x1b0] sm:$0xff]
    %v1513 = vld [vmem:[%s6 + $0x1b8] sm:$0xff]
    %v1514 = vld [vmem:[%s6 + $0x1c0] sm:$0xff]
    %v1515 = vld [vmem:[%s6 + $0x1c8] sm:$0xff]
    %v1516 = vld [vmem:[%s6 + $0x1d0] sm:$0xff]
    %v1517 = vld [vmem:[%s6 + $0x1d8] sm:$0xff]
    %v1518 = vld [vmem:[%s6 + $0x1e0] sm:$0xff]
    %v1519 = vld [vmem:[%s6 + $0x1e8] sm:$0xff]
    %v1520 = vld [vmem:[%s6 + $0x1f0] sm:$0xff]
    %v1521 = vld [vmem:[%s6 + $0x1f8] sm:$0xff]
    %v1522 = vld [vmem:[%s6 + $0x200] sm:$0xff]
    %v1523 = vld [vmem:[%s6 + $0x208] sm:$0xff]
    %v1524 = vld [vmem:[%s6 + $0x210] sm:$0xff]
    %v1525 = vld [vmem:[%s6 + $0x218] sm:$0xff]
    %v1526 = vld [vmem:[%s6 + $0x220] sm:$0xff]
    %v1527 = vld [vmem:[%s6 + $0x228] sm:$0xff]
    %v1528 = vld [vmem:[%s6 + $0x230] sm:$0xff]
    %v1529 = vld [vmem:[%s6 + $0x238] sm:$0xff]
    %v1530 = vld [vmem:[%s6 + $0x240] sm:$0xff]
    %v1531 = vld [vmem:[%s6 + $0x248] sm:$0xff]
    %v1532 = vld [vmem:[%s6 + $0x250] sm:$0xff]
    %v1533 = vld [vmem:[%s6 + $0x258] sm:$0xff]
    %v1534 = vld [vmem:[%s6 + $0x260] sm:$0xff]
    %v1535 = vld [vmem:[%s6 + $0x268] sm:$0xff]
    %v1536 = vld [vmem:[%s6 + $0x270] sm:$0xff]
    %v1537 = vld [vmem:[%s6 + $0x278] sm:$0xff]
    %v1538 = vld [vmem:[%s6 + $0x280] sm:$0xff]
    %v1539 = vld [vmem:[%s6 + $0x288] sm:$0xff]
    %v1540 = vld [vmem:[%s6 + $0x290] sm:$0xff]
    %v1541 = vld [vmem:[%s6 + $0x298] sm:$0xff]
    %v1542 = vld [vmem:[%s6 + $0x2a0] sm:$0xff]
    %v1543 = vld [vmem:[%s6 + $0x2a8] sm:$0xff]
    %v1544 = vld [vmem:[%s6 + $0x2b0] sm:$0xff]
    %v1545 = vld [vmem:[%s6 + $0x2b8] sm:$0xff]
    %v1546 = vld [vmem:[%s6 + $0x2c0] sm:$0xff]
    %v1547 = vld [vmem:[%s6 + $0x2c8] sm:$0xff]
    %v1548 = vld [vmem:[%s6 + $0x2d0] sm:$0xff]
    %v1549 = vld [vmem:[%s6 + $0x2d8] sm:$0xff]
    %v1550 = vld [vmem:[%s6 + $0x2e0] sm:$0xff]
    %v1551 = vld [vmem:[%s6 + $0x2e8] sm:$0xff]
    %v1552 = vld [vmem:[%s6 + $0x2f0] sm:$0xff]
    %v1553 = vld [vmem:[%s6 + $0x2f8] sm:$0xff]
    %v1554 = vld [vmem:[%s6 + $0x300] sm:$0xff]
    %v1555 = vld [vmem:[%s6 + $0x308] sm:$0xff]
    %v1556 = vld [vmem:[%s6 + $0x310] sm:$0xff]
    %v1557 = vld [vmem:[%s6 + $0x318] sm:$0xff]
    %v1558 = vld [vmem:[%s6 + $0x320] sm:$0xff]
    %v1559 = vld [vmem:[%s6 + $0x328] sm:$0xff]
    %v1560 = vld [vmem:[%s6 + $0x330] sm:$0xff]
    %v1561 = vld [vmem:[%s6 + $0x338] sm:$0xff]
    %v1562 = vld [vmem:[%s6 + $0x340] sm:$0xff]
    %v1563 = vld [vmem:[%s6 + $0x348] sm:$0xff]
    %v1564 = vld [vmem:[%s6 + $0x350] sm:$0xff]
    %v1565 = vld [vmem:[%s6 + $0x358] sm:$0xff]
    %v1566 = vld [vmem:[%s6 + $0x360] sm:$0xff]
    %v1567 = vld [vmem:[%s6 + $0x368] sm:$0xff]
    %v1568 = vld [vmem:[%s6 + $0x370] sm:$0xff]
    %v1569 = vld [vmem:[%s6 + $0x378] sm:$0xff]
    %v1570 = vld [vmem:[%s6 + $0x380] sm:$0xff]
    %v1571 = vld [vmem:[%s6 + $0x388] sm:$0xff]
    %v1572 = vld [vmem:[%s6 + $0x390] sm:$0xff]
    %v1573 = vld [vmem:[%s6 + $0x398] sm:$0xff]
    %v1574 = vld [vmem:[%s6 + $0x3a0] sm:$0xff]
    %v1575 = vld [vmem:[%s6 + $0x3a8] sm:$0xff]
    %v1576 = vld [vmem:[%s6 + $0x3b0] sm:$0xff]
    %v1577 = vld [vmem:[%s6 + $0x3b8] sm:$0xff]
    %v1578 = vld [vmem:[%s6 + $0x3c0] sm:$0xff]
    %v1579 = vld [vmem:[%s6 + $0x3c8] sm:$0xff]
    %v1580 = vld [vmem:[%s6 + $0x3d0] sm:$0xff]
    %v1581 = vld [vmem:[%s6 + $0x3d8] sm:$0xff]
    %v1582 = vld [vmem:[%s6 + $0x3e0] sm:$0xff]
    %v1583 = vld [vmem:[%s6 + $0x3e8] sm:$0xff]
    %v1584 = vld [vmem:[%s6 + $0x3f0] sm:$0xff]
    %v1585 = vld [vmem:[%s6 + $0x3f8] sm:$0xff]
    %v1586 = vld [vmem:[%s6 + $0x400] sm:$0xff]
    %v1587 = vld [vmem:[%s6 + $0x408] sm:$0xff]
    %v1588 = vld [vmem:[%s6 + $0x410] sm:$0xff]
    %v1589 = vld [vmem:[%s6 + $0x418] sm:$0xff]
    %v1590 = vld [vmem:[%s6 + $0x420] sm:$0xff]
    %v1591 = vld [vmem:[%s6 + $0x428] sm:$0xff]
    %v1592 = vld [vmem:[%s6 + $0x430] sm:$0xff]
    %v1593 = vld [vmem:[%s6 + $0x438] sm:$0xff]
    %v1594 = vld [vmem:[%s6 + $0x440] sm:$0xff]
    %v1595 = vld [vmem:[%s6 + $0x448] sm:$0xff]
    %v1596 = vld [vmem:[%s6 + $0x450] sm:$0xff]
    %v1597 = vld [vmem:[%s6 + $0x458] sm:$0xff]
    %v1598 = vld [vmem:[%s6 + $0x460] sm:$0xff]
    %v1599 = vld [vmem:[%s6 + $0x468] sm:$0xff]
    %v1600 = vld [vmem:[%s6 + $0x470] sm:$0xff]
    %v1601 = vld [vmem:[%s6 + $0x478] sm:$0xff]
    %v1602 = vld [vmem:[%s6 + $0x480] sm:$0xff]
    %v1603 = vld [vmem:[%s6 + $0x488] sm:$0xff]
    %v1604 = vld [vmem:[%s6 + $0x490] sm:$0xff]
    %v1605 = vld [vmem:[%s6 + $0x498] sm:$0xff]
    %v1606 = vld [vmem:[%s6 + $0x4a0] sm:$0xff]
    %v1607 = vld [vmem:[%s6 + $0x4a8] sm:$0xff]
    %v1608 = vld [vmem:[%s6 + $0x4b0] sm:$0xff]
    %v1609 = vld [vmem:[%s6 + $0x4b8] sm:$0xff]
    %v1610 = vld [vmem:[%s6 + $0x4c0] sm:$0xff]
    %v1611 = vld [vmem:[%s6 + $0x4c8] sm:$0xff]
    %v1612 = vld [vmem:[%s6 + $0x4d0] sm:$0xff]
    %v1613 = vld [vmem:[%s6 + $0x4d8] sm:$0xff]
    %v1614 = vld [vmem:[%s6 + $0x4e0] sm:$0xff]
    %v1615 = vld [vmem:[%s6 + $0x4e8] sm:$0xff]
    %v1616 = vld [vmem:[%s6 + $0x4f0] sm:$0xff]
    %v1617 = vld [vmem:[%s6 + $0x4f8] sm:$0xff]
    %v1618 = vld [vmem:[%s6 + $0x500] sm:$0xff]
    %v1619 = vld [vmem:[%s6 + $0x508] sm:$0xff]
    %v1620 = vld [vmem:[%s6 + $0x510] sm:$0xff]
    %v1621 = vld [vmem:[%s6 + $0x518] sm:$0xff]
    %v1622 = vld [vmem:[%s6 + $0x520] sm:$0xff]
    %v1623 = vld [vmem:[%s6 + $0x528] sm:$0xff]
    %v1624 = vld [vmem:[%s6 + $0x530] sm:$0xff]
    %v1625 = vld [vmem:[%s6 + $0x538] sm:$0xff]
    %v1626 = vld [vmem:[%s6 + $0x540] sm:$0xff]
    %v1627 = vld [vmem:[%s6 + $0x548] sm:$0xff]
    %v1628 = vld [vmem:[%s6 + $0x550] sm:$0xff]
    %v1629 = vld [vmem:[%s6 + $0x558] sm:$0xff]
    %v1630 = vld [vmem:[%s6 + $0x560] sm:$0xff]
    %v1631 = vld [vmem:[%s6 + $0x568] sm:$0xff]
    %v1632 = vld [vmem:[%s6 + $0x570] sm:$0xff]
    %v1633 = vld [vmem:[%s6 + $0x578] sm:$0xff]
    %v1634 = vld [vmem:[%s6 + $0x580] sm:$0xff]
    %v1635 = vld [vmem:[%s6 + $0x588] sm:$0xff]
    %v1636 = vld [vmem:[%s6 + $0x590] sm:$0xff]
    %v1637 = vld [vmem:[%s6 + $0x598] sm:$0xff]
    %v1638 = vld [vmem:[%s6 + $0x5a0] sm:$0xff]
    %v1639 = vld [vmem:[%s6 + $0x5a8] sm:$0xff]
    %v1640 = vld [vmem:[%s6 + $0x5b0] sm:$0xff]
    %v1641 = vld [vmem:[%s6 + $0x5b8] sm:$0xff]
    %v1642 = vld [vmem:[%s6 + $0x5c0] sm:$0xff]
    %v1643 = vld [vmem:[%s6 + $0x5c8] sm:$0xff]
    %v1644 = vld [vmem:[%s6 + $0x5d0] sm:$0xff]
    %v1645 = vld [vmem:[%s6 + $0x5d8] sm:$0xff]
    %v1646 = vld [vmem:[%s6 + $0x5e0] sm:$0xff]
    %v1647 = vld [vmem:[%s6 + $0x5e8] sm:$0xff]
    %v1648 = vld [vmem:[%s6 + $0x5f0] sm:$0xff]
    %v1649 = vld [vmem:[%s6 + $0x5f8] sm:$0xff]
    %v1650 = vld [vmem:[%s6 + $0x600] sm:$0xff]
    %v1651 = vld [vmem:[%s6 + $0x608] sm:$0xff]
    %v1652 = vld [vmem:[%s6 + $0x610] sm:$0xff]
    %v1653 = vld [vmem:[%s6 + $0x618] sm:$0xff]
    %v1654 = vld [vmem:[%s6 + $0x620] sm:$0xff]
    %v1655 = vld [vmem:[%s6 + $0x628] sm:$0xff]
    %v1656 = vld [vmem:[%s6 + $0x630] sm:$0xff]
    %v1657 = vld [vmem:[%s6 + $0x638] sm:$0xff]
    %v1658 = vld [vmem:[%s6 + $0x640] sm:$0xff]
    %v1659 = vld [vmem:[%s6 + $0x648] sm:$0xff]
    %v1660 = vld [vmem:[%s6 + $0x650] sm:$0xff]
    %v1661 = vld [vmem:[%s6 + $0x658] sm:$0xff]
    %v1662 = vld [vmem:[%s6 + $0x660] sm:$0xff]
    %v1663 = vld [vmem:[%s6 + $0x668] sm:$0xff]
    %v1664 = vld [vmem:[%s6 + $0x670] sm:$0xff]
    %v1665 = vld [vmem:[%s6 + $0x678] sm:$0xff]
    %v1666 = vld [vmem:[%s6 + $0x680] sm:$0xff]
    %v1667 = vld [vmem:[%s6 + $0x688] sm:$0xff]
    %v1668 = vld [vmem:[%s6 + $0x690] sm:$0xff]
    %v1669 = vld [vmem:[%s6 + $0x698] sm:$0xff]
    %v1670 = vld [vmem:[%s6 + $0x6a0] sm:$0xff]
    %v1671 = vld [vmem:[%s6 + $0x6a8] sm:$0xff]
    %v1672 = vld [vmem:[%s6 + $0x6b0] sm:$0xff]
    %v1673 = vld [vmem:[%s6 + $0x6b8] sm:$0xff]
    %v1674 = vld [vmem:[%s6 + $0x6c0] sm:$0xff]
    %v1675 = vld [vmem:[%s6 + $0x6c8] sm:$0xff]
    %v1676 = vld [vmem:[%s6 + $0x6d0] sm:$0xff]
    %v1677 = vld [vmem:[%s6 + $0x6d8] sm:$0xff]
    %v1678 = vld [vmem:[%s6 + $0x6e0] sm:$0xff]
    %v1679 = vld [vmem:[%s6 + $0x6e8] sm:$0xff]
    %v1680 = vld [vmem:[%s6 + $0x6f0] sm:$0xff]
    %v1681 = vld [vmem:[%s6 + $0x6f8] sm:$0xff]
    %v1682 = vld [vmem:[%s6 + $0x700] sm:$0xff]
    %v1683 = vld [vmem:[%s6 + $0x708] sm:$0xff]
    %v1684 = vld [vmem:[%s6 + $0x710] sm:$0xff]
    %v1685 = vld [vmem:[%s6 + $0x718] sm:$0xff]
    %v1686 = vld [vmem:[%s6 + $0x720] sm:$0xff]
    %v1687 = vld [vmem:[%s6 + $0x728] sm:$0xff]
    %v1688 = vld [vmem:[%s6 + $0x730] sm:$0xff]
    %v1689 = vld [vmem:[%s6 + $0x738] sm:$0xff]
    %v1690 = vld [vmem:[%s6 + $0x740] sm:$0xff]
    %v1691 = vld [vmem:[%s6 + $0x748] sm:$0xff]
    %v1692 = vld [vmem:[%s6 + $0x750] sm:$0xff]
    %v1693 = vld [vmem:[%s6 + $0x758] sm:$0xff]
    %v1694 = vld [vmem:[%s6 + $0x760] sm:$0xff]
    %v1695 = vld [vmem:[%s6 + $0x768] sm:$0xff]
    %v1696 = vld [vmem:[%s6 + $0x770] sm:$0xff]
    %v1697 = vld [vmem:[%s6 + $0x778] sm:$0xff]
    %v1698 = vld [vmem:[%s6 + $0x780] sm:$0xff]
    %v1699 = vld [vmem:[%s6 + $0x788] sm:$0xff]
    %v1700 = vld [vmem:[%s6 + $0x790] sm:$0xff]
    %v1701 = vld [vmem:[%s6 + $0x798] sm:$0xff]
    %v1702 = vld [vmem:[%s6 + $0x7a0] sm:$0xff]
    %v1703 = vld [vmem:[%s6 + $0x7a8] sm:$0xff]
    %v1704 = vld [vmem:[%s6 + $0x7b0] sm:$0xff]
    %v1705 = vld [vmem:[%s6 + $0x7b8] sm:$0xff]
    %v1706 = vld [vmem:[%s6 + $0x7c0] sm:$0xff]
    %v1707 = vld [vmem:[%s6 + $0x7c8] sm:$0xff]
    %v1708 = vld [vmem:[%s6 + $0x7d0] sm:$0xff]
    %v1709 = vld [vmem:[%s6 + $0x7d8] sm:$0xff]
    %v1710 = vld [vmem:[%s6 + $0x7e0] sm:$0xff]
    %v1711 = vld [vmem:[%s6 + $0x7e8] sm:$0xff]
    %v1712 = vld [vmem:[%s6 + $0x7f0] sm:$0xff]
    %v1713 = vld [vmem:[%s6 + $0x7f8] sm:$0xff]
    %v1714 = vld [vmem:[%s7] sm:$0xf]
    %v1716 = vlaneseq
    %v1717 = vshrl.u32 %v1716, 7
    %v1718 = vsub.s32 0, %v1717
    %v1719 = vrot.slane %v1714, %v1718
    %v1720 = vlaneseq
    %v1721 = vshrl.u32 %v1720, 7
    %v1722 = vsub.s32 1, %v1721
    %v1723 = vrot.slane %v1714, %v1722
    %v1724 = vlaneseq
    %v1725 = vshrl.u32 %v1724, 7
    %v1726 = vsub.s32 2, %v1725
    %v1727 = vrot.slane %v1714, %v1726
    %v1728 = vlaneseq
    %v1729 = vshrl.u32 %v1728, 7
    %v1730 = vsub.s32 3, %v1729
    %v1731 = vrot.slane %v1714, %v1730
    %v1992 = vunpack.c.l.b16 %v1458
    %v1993 = vunpack.c.h.b16 %v1458
    %v1994 = vunpack.c.l.b16 %v1459
    %v1995 = vunpack.c.h.b16 %v1459
    %v1996 = vunpack.c.l.b16 %v1460
    %v1997 = vunpack.c.h.b16 %v1460
    %v1998 = vunpack.c.l.b16 %v1461
    %v1999 = vunpack.c.h.b16 %v1461
    %v2000 = vunpack.c.l.b16 %v1462
    %v2001 = vunpack.c.h.b16 %v1462
    %v2002 = vunpack.c.l.b16 %v1463
    %v2003 = vunpack.c.h.b16 %v1463
    %v2004 = vunpack.c.l.b16 %v1464
    %v2005 = vunpack.c.h.b16 %v1464
    %v2006 = vunpack.c.l.b16 %v1465
    %v2007 = vunpack.c.h.b16 %v1465
    %v2008 = vunpack.c.l.b16 %v1466
    %v2009 = vunpack.c.h.b16 %v1466
    %v2010 = vunpack.c.l.b16 %v1467
    %v2011 = vunpack.c.h.b16 %v1467
    %v2012 = vunpack.c.l.b16 %v1468
    %v2013 = vunpack.c.h.b16 %v1468
    %v2014 = vunpack.c.l.b16 %v1469
    %v2015 = vunpack.c.h.b16 %v1469
    %v2016 = vunpack.c.l.b16 %v1470
    %v2017 = vunpack.c.h.b16 %v1470
    %v2018 = vunpack.c.l.b16 %v1471
    %v2019 = vunpack.c.h.b16 %v1471
    %v2020 = vunpack.c.l.b16 %v1472
    %v2021 = vunpack.c.h.b16 %v1472
    %v2022 = vunpack.c.l.b16 %v1473
    %v2023 = vunpack.c.h.b16 %v1473
    %v2024 = vunpack.c.l.b16 %v1474
    %v2025 = vunpack.c.h.b16 %v1474
    %v2026 = vunpack.c.l.b16 %v1475
    %v2027 = vunpack.c.h.b16 %v1475
    %v2028 = vunpack.c.l.b16 %v1476
    %v2029 = vunpack.c.h.b16 %v1476
    %v2030 = vunpack.c.l.b16 %v1477
    %v2031 = vunpack.c.h.b16 %v1477
    %v2032 = vunpack.c.l.b16 %v1478
    %v2033 = vunpack.c.h.b16 %v1478
    %v2034 = vunpack.c.l.b16 %v1479
    %v2035 = vunpack.c.h.b16 %v1479
    %v2036 = vunpack.c.l.b16 %v1480
    %v2037 = vunpack.c.h.b16 %v1480
    %v2038 = vunpack.c.l.b16 %v1481
    %v2039 = vunpack.c.h.b16 %v1481
    %v2040 = vunpack.c.l.b16 %v1482
    %v2041 = vunpack.c.h.b16 %v1482
    %v2042 = vunpack.c.l.b16 %v1483
    %v2043 = vunpack.c.h.b16 %v1483
    %v2044 = vunpack.c.l.b16 %v1484
    %v2045 = vunpack.c.h.b16 %v1484
    %v2046 = vunpack.c.l.b16 %v1485
    %v2047 = vunpack.c.h.b16 %v1485
    %v2048 = vunpack.c.l.b16 %v1486
    %v2049 = vunpack.c.h.b16 %v1486
    %v2050 = vunpack.c.l.b16 %v1487
    %v2051 = vunpack.c.h.b16 %v1487
    %v2052 = vunpack.c.l.b16 %v1488
    %v2053 = vunpack.c.h.b16 %v1488
    %v2054 = vunpack.c.l.b16 %v1489
    %v2055 = vunpack.c.h.b16 %v1489
    %v2056 = vunpack.c.l.b16 %v1490
    %v2057 = vunpack.c.h.b16 %v1490
    %v2058 = vunpack.c.l.b16 %v1491
    %v2059 = vunpack.c.h.b16 %v1491
    %v2060 = vunpack.c.l.b16 %v1492
    %v2061 = vunpack.c.h.b16 %v1492
    %v2062 = vunpack.c.l.b16 %v1493
    %v2063 = vunpack.c.h.b16 %v1493
    %v2064 = vunpack.c.l.b16 %v1494
    %v2065 = vunpack.c.h.b16 %v1494
    %v2066 = vunpack.c.l.b16 %v1495
    %v2067 = vunpack.c.h.b16 %v1495
    %v2068 = vunpack.c.l.b16 %v1496
    %v2069 = vunpack.c.h.b16 %v1496
    %v2070 = vunpack.c.l.b16 %v1497
    %v2071 = vunpack.c.h.b16 %v1497
    %v2072 = vunpack.c.l.b16 %v1498
    %v2073 = vunpack.c.h.b16 %v1498
    %v2074 = vunpack.c.l.b16 %v1499
    %v2075 = vunpack.c.h.b16 %v1499
    %v2076 = vunpack.c.l.b16 %v1500
    %v2077 = vunpack.c.h.b16 %v1500
    %v2078 = vunpack.c.l.b16 %v1501
    %v2079 = vunpack.c.h.b16 %v1501
    %v2080 = vunpack.c.l.b16 %v1502
    %v2081 = vunpack.c.h.b16 %v1502
    %v2082 = vunpack.c.l.b16 %v1503
    %v2083 = vunpack.c.h.b16 %v1503
    %v2084 = vunpack.c.l.b16 %v1504
    %v2085 = vunpack.c.h.b16 %v1504
    %v2086 = vunpack.c.l.b16 %v1505
    %v2087 = vunpack.c.h.b16 %v1505
    %v2088 = vunpack.c.l.b16 %v1506
    %v2089 = vunpack.c.h.b16 %v1506
    %v2090 = vunpack.c.l.b16 %v1507
    %v2091 = vunpack.c.h.b16 %v1507
    %v2092 = vunpack.c.l.b16 %v1508
    %v2093 = vunpack.c.h.b16 %v1508
    %v2094 = vunpack.c.l.b16 %v1509
    %v2095 = vunpack.c.h.b16 %v1509
    %v2096 = vunpack.c.l.b16 %v1510
    %v2097 = vunpack.c.h.b16 %v1510
    %v2098 = vunpack.c.l.b16 %v1511
    %v2099 = vunpack.c.h.b16 %v1511
    %v2100 = vunpack.c.l.b16 %v1512
    %v2101 = vunpack.c.h.b16 %v1512
    %v2102 = vunpack.c.l.b16 %v1513
    %v2103 = vunpack.c.h.b16 %v1513
    %v2104 = vunpack.c.l.b16 %v1514
    %v2105 = vunpack.c.h.b16 %v1514
    %v2106 = vunpack.c.l.b16 %v1515
    %v2107 = vunpack.c.h.b16 %v1515
    %v2108 = vunpack.c.l.b16 %v1516
    %v2109 = vunpack.c.h.b16 %v1516
    %v2110 = vunpack.c.l.b16 %v1517
    %v2111 = vunpack.c.h.b16 %v1517
    %v2112 = vunpack.c.l.b16 %v1518
    %v2113 = vunpack.c.h.b16 %v1518
    %v2114 = vunpack.c.l.b16 %v1519
    %v2115 = vunpack.c.h.b16 %v1519
    %v2116 = vunpack.c.l.b16 %v1520
    %v2117 = vunpack.c.h.b16 %v1520
    %v2118 = vunpack.c.l.b16 %v1521
    %v2119 = vunpack.c.h.b16 %v1521
    %v2120 = vunpack.c.l.b16 %v1522
    %v2121 = vunpack.c.h.b16 %v1522
    %v2122 = vunpack.c.l.b16 %v1523
    %v2123 = vunpack.c.h.b16 %v1523
    %v2124 = vunpack.c.l.b16 %v1524
    %v2125 = vunpack.c.h.b16 %v1524
    %v2126 = vunpack.c.l.b16 %v1525
    %v2127 = vunpack.c.h.b16 %v1525
    %v2128 = vunpack.c.l.b16 %v1526
    %v2129 = vunpack.c.h.b16 %v1526
    %v2130 = vunpack.c.l.b16 %v1527
    %v2131 = vunpack.c.h.b16 %v1527
    %v2132 = vunpack.c.l.b16 %v1528
    %v2133 = vunpack.c.h.b16 %v1528
    %v2134 = vunpack.c.l.b16 %v1529
    %v2135 = vunpack.c.h.b16 %v1529
    %v2136 = vunpack.c.l.b16 %v1530
    %v2137 = vunpack.c.h.b16 %v1530
    %v2138 = vunpack.c.l.b16 %v1531
    %v2139 = vunpack.c.h.b16 %v1531
    %v2140 = vunpack.c.l.b16 %v1532
    %v2141 = vunpack.c.h.b16 %v1532
    %v2142 = vunpack.c.l.b16 %v1533
    %v2143 = vunpack.c.h.b16 %v1533
    %v2144 = vunpack.c.l.b16 %v1534
    %v2145 = vunpack.c.h.b16 %v1534
    %v2146 = vunpack.c.l.b16 %v1535
    %v2147 = vunpack.c.h.b16 %v1535
    %v2148 = vunpack.c.l.b16 %v1536
    %v2149 = vunpack.c.h.b16 %v1536
    %v2150 = vunpack.c.l.b16 %v1537
    %v2151 = vunpack.c.h.b16 %v1537
    %v2152 = vunpack.c.l.b16 %v1538
    %v2153 = vunpack.c.h.b16 %v1538
    %v2154 = vunpack.c.l.b16 %v1539
    %v2155 = vunpack.c.h.b16 %v1539
    %v2156 = vunpack.c.l.b16 %v1540
    %v2157 = vunpack.c.h.b16 %v1540
    %v2158 = vunpack.c.l.b16 %v1541
    %v2159 = vunpack.c.h.b16 %v1541
    %v2160 = vunpack.c.l.b16 %v1542
    %v2161 = vunpack.c.h.b16 %v1542
    %v2162 = vunpack.c.l.b16 %v1543
    %v2163 = vunpack.c.h.b16 %v1543
    %v2164 = vunpack.c.l.b16 %v1544
    %v2165 = vunpack.c.h.b16 %v1544
    %v2166 = vunpack.c.l.b16 %v1545
    %v2167 = vunpack.c.h.b16 %v1545
    %v2168 = vunpack.c.l.b16 %v1546
    %v2169 = vunpack.c.h.b16 %v1546
    %v2170 = vunpack.c.l.b16 %v1547
    %v2171 = vunpack.c.h.b16 %v1547
    %v2172 = vunpack.c.l.b16 %v1548
    %v2173 = vunpack.c.h.b16 %v1548
    %v2174 = vunpack.c.l.b16 %v1549
    %v2175 = vunpack.c.h.b16 %v1549
    %v2176 = vunpack.c.l.b16 %v1550
    %v2177 = vunpack.c.h.b16 %v1550
    %v2178 = vunpack.c.l.b16 %v1551
    %v2179 = vunpack.c.h.b16 %v1551
    %v2180 = vunpack.c.l.b16 %v1552
    %v2181 = vunpack.c.h.b16 %v1552
    %v2182 = vunpack.c.l.b16 %v1553
    %v2183 = vunpack.c.h.b16 %v1553
    %v2184 = vunpack.c.l.b16 %v1554
    %v2185 = vunpack.c.h.b16 %v1554
    %v2186 = vunpack.c.l.b16 %v1555
    %v2187 = vunpack.c.h.b16 %v1555
    %v2188 = vunpack.c.l.b16 %v1556
    %v2189 = vunpack.c.h.b16 %v1556
    %v2190 = vunpack.c.l.b16 %v1557
    %v2191 = vunpack.c.h.b16 %v1557
    %v2192 = vunpack.c.l.b16 %v1558
    %v2193 = vunpack.c.h.b16 %v1558
    %v2194 = vunpack.c.l.b16 %v1559
    %v2195 = vunpack.c.h.b16 %v1559
    %v2196 = vunpack.c.l.b16 %v1560
    %v2197 = vunpack.c.h.b16 %v1560
    %v2198 = vunpack.c.l.b16 %v1561
    %v2199 = vunpack.c.h.b16 %v1561
    %v2200 = vunpack.c.l.b16 %v1562
    %v2201 = vunpack.c.h.b16 %v1562
    %v2202 = vunpack.c.l.b16 %v1563
    %v2203 = vunpack.c.h.b16 %v1563
    %v2204 = vunpack.c.l.b16 %v1564
    %v2205 = vunpack.c.h.b16 %v1564
    %v2206 = vunpack.c.l.b16 %v1565
    %v2207 = vunpack.c.h.b16 %v1565
    %v2208 = vunpack.c.l.b16 %v1566
    %v2209 = vunpack.c.h.b16 %v1566
    %v2210 = vunpack.c.l.b16 %v1567
    %v2211 = vunpack.c.h.b16 %v1567
    %v2212 = vunpack.c.l.b16 %v1568
    %v2213 = vunpack.c.h.b16 %v1568
    %v2214 = vunpack.c.l.b16 %v1569
    %v2215 = vunpack.c.h.b16 %v1569
    %v2216 = vunpack.c.l.b16 %v1570
    %v2217 = vunpack.c.h.b16 %v1570
    %v2218 = vunpack.c.l.b16 %v1571
    %v2219 = vunpack.c.h.b16 %v1571
    %v2220 = vunpack.c.l.b16 %v1572
    %v2221 = vunpack.c.h.b16 %v1572
    %v2222 = vunpack.c.l.b16 %v1573
    %v2223 = vunpack.c.h.b16 %v1573
    %v2224 = vunpack.c.l.b16 %v1574
    %v2225 = vunpack.c.h.b16 %v1574
    %v2226 = vunpack.c.l.b16 %v1575
    %v2227 = vunpack.c.h.b16 %v1575
    %v2228 = vunpack.c.l.b16 %v1576
    %v2229 = vunpack.c.h.b16 %v1576
    %v2230 = vunpack.c.l.b16 %v1577
    %v2231 = vunpack.c.h.b16 %v1577
    %v2232 = vunpack.c.l.b16 %v1578
    %v2233 = vunpack.c.h.b16 %v1578
    %v2234 = vunpack.c.l.b16 %v1579
    %v2235 = vunpack.c.h.b16 %v1579
    %v2236 = vunpack.c.l.b16 %v1580
    %v2237 = vunpack.c.h.b16 %v1580
    %v2238 = vunpack.c.l.b16 %v1581
    %v2239 = vunpack.c.h.b16 %v1581
    %v2240 = vunpack.c.l.b16 %v1582
    %v2241 = vunpack.c.h.b16 %v1582
    %v2242 = vunpack.c.l.b16 %v1583
    %v2243 = vunpack.c.h.b16 %v1583
    %v2244 = vunpack.c.l.b16 %v1584
    %v2245 = vunpack.c.h.b16 %v1584
    %v2246 = vunpack.c.l.b16 %v1585
    %v2247 = vunpack.c.h.b16 %v1585
    %v2248 = vunpack.c.l.b16 %v1586
    %v2249 = vunpack.c.h.b16 %v1586
    %v2250 = vunpack.c.l.b16 %v1587
    %v2251 = vunpack.c.h.b16 %v1587
    %v2252 = vunpack.c.l.b16 %v1588
    %v2253 = vunpack.c.h.b16 %v1588
    %v2254 = vunpack.c.l.b16 %v1589
    %v2255 = vunpack.c.h.b16 %v1589
    %v2256 = vunpack.c.l.b16 %v1590
    %v2257 = vunpack.c.h.b16 %v1590
    %v2258 = vunpack.c.l.b16 %v1591
    %v2259 = vunpack.c.h.b16 %v1591
    %v2260 = vunpack.c.l.b16 %v1592
    %v2261 = vunpack.c.h.b16 %v1592
    %v2262 = vunpack.c.l.b16 %v1593
    %v2263 = vunpack.c.h.b16 %v1593
    %v2264 = vunpack.c.l.b16 %v1594
    %v2265 = vunpack.c.h.b16 %v1594
    %v2266 = vunpack.c.l.b16 %v1595
    %v2267 = vunpack.c.h.b16 %v1595
    %v2268 = vunpack.c.l.b16 %v1596
    %v2269 = vunpack.c.h.b16 %v1596
    %v2270 = vunpack.c.l.b16 %v1597
    %v2271 = vunpack.c.h.b16 %v1597
    %v2272 = vunpack.c.l.b16 %v1598
    %v2273 = vunpack.c.h.b16 %v1598
    %v2274 = vunpack.c.l.b16 %v1599
    %v2275 = vunpack.c.h.b16 %v1599
    %v2276 = vunpack.c.l.b16 %v1600
    %v2277 = vunpack.c.h.b16 %v1600
    %v2278 = vunpack.c.l.b16 %v1601
    %v2279 = vunpack.c.h.b16 %v1601
    %v2280 = vunpack.c.l.b16 %v1602
    %v2281 = vunpack.c.h.b16 %v1602
    %v2282 = vunpack.c.l.b16 %v1603
    %v2283 = vunpack.c.h.b16 %v1603
    %v2284 = vunpack.c.l.b16 %v1604
    %v2285 = vunpack.c.h.b16 %v1604
    %v2286 = vunpack.c.l.b16 %v1605
    %v2287 = vunpack.c.h.b16 %v1605
    %v2288 = vunpack.c.l.b16 %v1606
    %v2289 = vunpack.c.h.b16 %v1606
    %v2290 = vunpack.c.l.b16 %v1607
    %v2291 = vunpack.c.h.b16 %v1607
    %v2292 = vunpack.c.l.b16 %v1608
    %v2293 = vunpack.c.h.b16 %v1608
    %v2294 = vunpack.c.l.b16 %v1609
    %v2295 = vunpack.c.h.b16 %v1609
    %v2296 = vunpack.c.l.b16 %v1610
    %v2297 = vunpack.c.h.b16 %v1610
    %v2298 = vunpack.c.l.b16 %v1611
    %v2299 = vunpack.c.h.b16 %v1611
    %v2300 = vunpack.c.l.b16 %v1612
    %v2301 = vunpack.c.h.b16 %v1612
    %v2302 = vunpack.c.l.b16 %v1613
    %v2303 = vunpack.c.h.b16 %v1613
    %v2304 = vunpack.c.l.b16 %v1614
    %v2305 = vunpack.c.h.b16 %v1614
    %v2306 = vunpack.c.l.b16 %v1615
    %v2307 = vunpack.c.h.b16 %v1615
    %v2308 = vunpack.c.l.b16 %v1616
    %v2309 = vunpack.c.h.b16 %v1616
    %v2310 = vunpack.c.l.b16 %v1617
    %v2311 = vunpack.c.h.b16 %v1617
    %v2312 = vunpack.c.l.b16 %v1618
    %v2313 = vunpack.c.h.b16 %v1618
    %v2314 = vunpack.c.l.b16 %v1619
    %v2315 = vunpack.c.h.b16 %v1619
    %v2316 = vunpack.c.l.b16 %v1620
    %v2317 = vunpack.c.h.b16 %v1620
    %v2318 = vunpack.c.l.b16 %v1621
    %v2319 = vunpack.c.h.b16 %v1621
    %v2320 = vunpack.c.l.b16 %v1622
    %v2321 = vunpack.c.h.b16 %v1622
    %v2322 = vunpack.c.l.b16 %v1623
    %v2323 = vunpack.c.h.b16 %v1623
    %v2324 = vunpack.c.l.b16 %v1624
    %v2325 = vunpack.c.h.b16 %v1624
    %v2326 = vunpack.c.l.b16 %v1625
    %v2327 = vunpack.c.h.b16 %v1625
    %v2328 = vunpack.c.l.b16 %v1626
    %v2329 = vunpack.c.h.b16 %v1626
    %v2330 = vunpack.c.l.b16 %v1627
    %v2331 = vunpack.c.h.b16 %v1627
    %v2332 = vunpack.c.l.b16 %v1628
    %v2333 = vunpack.c.h.b16 %v1628
    %v2334 = vunpack.c.l.b16 %v1629
    %v2335 = vunpack.c.h.b16 %v1629
    %v2336 = vunpack.c.l.b16 %v1630
    %v2337 = vunpack.c.h.b16 %v1630
    %v2338 = vunpack.c.l.b16 %v1631
    %v2339 = vunpack.c.h.b16 %v1631
    %v2340 = vunpack.c.l.b16 %v1632
    %v2341 = vunpack.c.h.b16 %v1632
    %v2342 = vunpack.c.l.b16 %v1633
    %v2343 = vunpack.c.h.b16 %v1633
    %v2344 = vunpack.c.l.b16 %v1634
    %v2345 = vunpack.c.h.b16 %v1634
    %v2346 = vunpack.c.l.b16 %v1635
    %v2347 = vunpack.c.h.b16 %v1635
    %v2348 = vunpack.c.l.b16 %v1636
    %v2349 = vunpack.c.h.b16 %v1636
    %v2350 = vunpack.c.l.b16 %v1637
    %v2351 = vunpack.c.h.b16 %v1637
    %v2352 = vunpack.c.l.b16 %v1638
    %v2353 = vunpack.c.h.b16 %v1638
    %v2354 = vunpack.c.l.b16 %v1639
    %v2355 = vunpack.c.h.b16 %v1639
    %v2356 = vunpack.c.l.b16 %v1640
    %v2357 = vunpack.c.h.b16 %v1640
    %v2358 = vunpack.c.l.b16 %v1641
    %v2359 = vunpack.c.h.b16 %v1641
    %v2360 = vunpack.c.l.b16 %v1642
    %v2361 = vunpack.c.h.b16 %v1642
    %v2362 = vunpack.c.l.b16 %v1643
    %v2363 = vunpack.c.h.b16 %v1643
    %v2364 = vunpack.c.l.b16 %v1644
    %v2365 = vunpack.c.h.b16 %v1644
    %v2366 = vunpack.c.l.b16 %v1645
    %v2367 = vunpack.c.h.b16 %v1645
    %v2368 = vunpack.c.l.b16 %v1646
    %v2369 = vunpack.c.h.b16 %v1646
    %v2370 = vunpack.c.l.b16 %v1647
    %v2371 = vunpack.c.h.b16 %v1647
    %v2372 = vunpack.c.l.b16 %v1648
    %v2373 = vunpack.c.h.b16 %v1648
    %v2374 = vunpack.c.l.b16 %v1649
    %v2375 = vunpack.c.h.b16 %v1649
    %v2376 = vunpack.c.l.b16 %v1650
    %v2377 = vunpack.c.h.b16 %v1650
    %v2378 = vunpack.c.l.b16 %v1651
    %v2379 = vunpack.c.h.b16 %v1651
    %v2380 = vunpack.c.l.b16 %v1652
    %v2381 = vunpack.c.h.b16 %v1652
    %v2382 = vunpack.c.l.b16 %v1653
    %v2383 = vunpack.c.h.b16 %v1653
    %v2384 = vunpack.c.l.b16 %v1654
    %v2385 = vunpack.c.h.b16 %v1654
    %v2386 = vunpack.c.l.b16 %v1655
    %v2387 = vunpack.c.h.b16 %v1655
    %v2388 = vunpack.c.l.b16 %v1656
    %v2389 = vunpack.c.h.b16 %v1656
    %v2390 = vunpack.c.l.b16 %v1657
    %v2391 = vunpack.c.h.b16 %v1657
    %v2392 = vunpack.c.l.b16 %v1658
    %v2393 = vunpack.c.h.b16 %v1658
    %v2394 = vunpack.c.l.b16 %v1659
    %v2395 = vunpack.c.h.b16 %v1659
    %v2396 = vunpack.c.l.b16 %v1660
    %v2397 = vunpack.c.h.b16 %v1660
    %v2398 = vunpack.c.l.b16 %v1661
    %v2399 = vunpack.c.h.b16 %v1661
    %v2400 = vunpack.c.l.b16 %v1662
    %v2401 = vunpack.c.h.b16 %v1662
    %v2402 = vunpack.c.l.b16 %v1663
    %v2403 = vunpack.c.h.b16 %v1663
    %v2404 = vunpack.c.l.b16 %v1664
    %v2405 = vunpack.c.h.b16 %v1664
    %v2406 = vunpack.c.l.b16 %v1665
    %v2407 = vunpack.c.h.b16 %v1665
    %v2408 = vunpack.c.l.b16 %v1666
    %v2409 = vunpack.c.h.b16 %v1666
    %v2410 = vunpack.c.l.b16 %v1667
    %v2411 = vunpack.c.h.b16 %v1667
    %v2412 = vunpack.c.l.b16 %v1668
    %v2413 = vunpack.c.h.b16 %v1668
    %v2414 = vunpack.c.l.b16 %v1669
    %v2415 = vunpack.c.h.b16 %v1669
    %v2416 = vunpack.c.l.b16 %v1670
    %v2417 = vunpack.c.h.b16 %v1670
    %v2418 = vunpack.c.l.b16 %v1671
    %v2419 = vunpack.c.h.b16 %v1671
    %v2420 = vunpack.c.l.b16 %v1672
    %v2421 = vunpack.c.h.b16 %v1672
    %v2422 = vunpack.c.l.b16 %v1673
    %v2423 = vunpack.c.h.b16 %v1673
    %v2424 = vunpack.c.l.b16 %v1674
    %v2425 = vunpack.c.h.b16 %v1674
    %v2426 = vunpack.c.l.b16 %v1675
    %v2427 = vunpack.c.h.b16 %v1675
    %v2428 = vunpack.c.l.b16 %v1676
    %v2429 = vunpack.c.h.b16 %v1676
    %v2430 = vunpack.c.l.b16 %v1677
    %v2431 = vunpack.c.h.b16 %v1677
    %v2432 = vunpack.c.l.b16 %v1678
    %v2433 = vunpack.c.h.b16 %v1678
    %v2434 = vunpack.c.l.b16 %v1679
    %v2435 = vunpack.c.h.b16 %v1679
    %v2436 = vunpack.c.l.b16 %v1680
    %v2437 = vunpack.c.h.b16 %v1680
    %v2438 = vunpack.c.l.b16 %v1681
    %v2439 = vunpack.c.h.b16 %v1681
    %v2440 = vunpack.c.l.b16 %v1682
    %v2441 = vunpack.c.h.b16 %v1682
    %v2442 = vunpack.c.l.b16 %v1683
    %v2443 = vunpack.c.h.b16 %v1683
    %v2444 = vunpack.c.l.b16 %v1684
    %v2445 = vunpack.c.h.b16 %v1684
    %v2446 = vunpack.c.l.b16 %v1685
    %v2447 = vunpack.c.h.b16 %v1685
    %v2448 = vunpack.c.l.b16 %v1686
    %v2449 = vunpack.c.h.b16 %v1686
    %v2450 = vunpack.c.l.b16 %v1687
    %v2451 = vunpack.c.h.b16 %v1687
    %v2452 = vunpack.c.l.b16 %v1688
    %v2453 = vunpack.c.h.b16 %v1688
    %v2454 = vunpack.c.l.b16 %v1689
    %v2455 = vunpack.c.h.b16 %v1689
    %v2456 = vunpack.c.l.b16 %v1690
    %v2457 = vunpack.c.h.b16 %v1690
    %v2458 = vunpack.c.l.b16 %v1691
    %v2459 = vunpack.c.h.b16 %v1691
    %v2460 = vunpack.c.l.b16 %v1692
    %v2461 = vunpack.c.h.b16 %v1692
    %v2462 = vunpack.c.l.b16 %v1693
    %v2463 = vunpack.c.h.b16 %v1693
    %v2464 = vunpack.c.l.b16 %v1694
    %v2465 = vunpack.c.h.b16 %v1694
    %v2466 = vunpack.c.l.b16 %v1695
    %v2467 = vunpack.c.h.b16 %v1695
    %v2468 = vunpack.c.l.b16 %v1696
    %v2469 = vunpack.c.h.b16 %v1696
    %v2470 = vunpack.c.l.b16 %v1697
    %v2471 = vunpack.c.h.b16 %v1697
    %v2472 = vunpack.c.l.b16 %v1698
    %v2473 = vunpack.c.h.b16 %v1698
    %v2474 = vunpack.c.l.b16 %v1699
    %v2475 = vunpack.c.h.b16 %v1699
    %v2476 = vunpack.c.l.b16 %v1700
    %v2477 = vunpack.c.h.b16 %v1700
    %v2478 = vunpack.c.l.b16 %v1701
    %v2479 = vunpack.c.h.b16 %v1701
    %v2480 = vunpack.c.l.b16 %v1702
    %v2481 = vunpack.c.h.b16 %v1702
    %v2482 = vunpack.c.l.b16 %v1703
    %v2483 = vunpack.c.h.b16 %v1703
    %v2484 = vunpack.c.l.b16 %v1704
    %v2485 = vunpack.c.h.b16 %v1704
    %v2486 = vunpack.c.l.b16 %v1705
    %v2487 = vunpack.c.h.b16 %v1705
    %v2488 = vunpack.c.l.b16 %v1706
    %v2489 = vunpack.c.h.b16 %v1706
    %v2490 = vunpack.c.l.b16 %v1707
    %v2491 = vunpack.c.h.b16 %v1707
    %v2492 = vunpack.c.l.b16 %v1708
    %v2493 = vunpack.c.h.b16 %v1708
    %v2494 = vunpack.c.l.b16 %v1709
    %v2495 = vunpack.c.h.b16 %v1709
    %v2496 = vunpack.c.l.b16 %v1710
    %v2497 = vunpack.c.h.b16 %v1710
    %v2498 = vunpack.c.l.b16 %v1711
    %v2499 = vunpack.c.h.b16 %v1711
    %v2500 = vunpack.c.l.b16 %v1712
    %v2501 = vunpack.c.h.b16 %v1712
    %v2502 = vunpack.c.l.b16 %v1713
    %v2503 = vunpack.c.h.b16 %v1713
    %v2504 = vpack.c.b16 %v1996, %v1992
    %v2505 = vpack.c.b16 %v1997, %v1993
    %v2506 = vpack.c.b16 %v1998, %v1994
    %v2507 = vpack.c.b16 %v1999, %v1995
    %v2508 = vpack.c.b16 %v2004, %v2000
    %v2509 = vpack.c.b16 %v2005, %v2001
    %v2510 = vpack.c.b16 %v2006, %v2002
    %v2511 = vpack.c.b16 %v2007, %v2003
    %v2512 = vpack.c.b16 %v2012, %v2008
    %v2513 = vpack.c.b16 %v2013, %v2009
    %v2514 = vpack.c.b16 %v2014, %v2010
    %v2515 = vpack.c.b16 %v2015, %v2011
    %v2516 = vpack.c.b16 %v2020, %v2016
    %v2517 = vpack.c.b16 %v2021, %v2017
    %v2518 = vpack.c.b16 %v2022, %v2018
    %v2519 = vpack.c.b16 %v2023, %v2019
    %v2520 = vpack.c.b16 %v2028, %v2024
    %v2521 = vpack.c.b16 %v2029, %v2025
    %v2522 = vpack.c.b16 %v2030, %v2026
    %v2523 = vpack.c.b16 %v2031, %v2027
    %v2524 = vpack.c.b16 %v2036, %v2032
    %v2525 = vpack.c.b16 %v2037, %v2033
    %v2526 = vpack.c.b16 %v2038, %v2034
    %v2527 = vpack.c.b16 %v2039, %v2035
    %v2528 = vpack.c.b16 %v2044, %v2040
    %v2529 = vpack.c.b16 %v2045, %v2041
    %v2530 = vpack.c.b16 %v2046, %v2042
    %v2531 = vpack.c.b16 %v2047, %v2043
    %v2532 = vpack.c.b16 %v2052, %v2048
    %v2533 = vpack.c.b16 %v2053, %v2049
    %v2534 = vpack.c.b16 %v2054, %v2050
    %v2535 = vpack.c.b16 %v2055, %v2051
    %v2536 = vpack.c.b16 %v2060, %v2056
    %v2537 = vpack.c.b16 %v2061, %v2057
    %v2538 = vpack.c.b16 %v2062, %v2058
    %v2539 = vpack.c.b16 %v2063, %v2059
    %v2540 = vpack.c.b16 %v2068, %v2064
    %v2541 = vpack.c.b16 %v2069, %v2065
    %v2542 = vpack.c.b16 %v2070, %v2066
    %v2543 = vpack.c.b16 %v2071, %v2067
    %v2544 = vpack.c.b16 %v2076, %v2072
    %v2545 = vpack.c.b16 %v2077, %v2073
    %v2546 = vpack.c.b16 %v2078, %v2074
    %v2547 = vpack.c.b16 %v2079, %v2075
    %v2548 = vpack.c.b16 %v2084, %v2080
    %v2549 = vpack.c.b16 %v2085, %v2081
    %v2550 = vpack.c.b16 %v2086, %v2082
    %v2551 = vpack.c.b16 %v2087, %v2083
    %v2552 = vpack.c.b16 %v2092, %v2088
    %v2553 = vpack.c.b16 %v2093, %v2089
    %v2554 = vpack.c.b16 %v2094, %v2090
    %v2555 = vpack.c.b16 %v2095, %v2091
    %v2556 = vpack.c.b16 %v2100, %v2096
    %v2557 = vpack.c.b16 %v2101, %v2097
    %v2558 = vpack.c.b16 %v2102, %v2098
    %v2559 = vpack.c.b16 %v2103, %v2099
    %v2560 = vpack.c.b16 %v2108, %v2104
    %v2561 = vpack.c.b16 %v2109, %v2105
    %v2562 = vpack.c.b16 %v2110, %v2106
    %v2563 = vpack.c.b16 %v2111, %v2107
    %v2564 = vpack.c.b16 %v2116, %v2112
    %v2565 = vpack.c.b16 %v2117, %v2113
    %v2566 = vpack.c.b16 %v2118, %v2114
    %v2567 = vpack.c.b16 %v2119, %v2115
    %v2568 = vpack.c.b16 %v2124, %v2120
    %v2569 = vpack.c.b16 %v2125, %v2121
    %v2570 = vpack.c.b16 %v2126, %v2122
    %v2571 = vpack.c.b16 %v2127, %v2123
    %v2572 = vpack.c.b16 %v2132, %v2128
    %v2573 = vpack.c.b16 %v2133, %v2129
    %v2574 = vpack.c.b16 %v2134, %v2130
    %v2575 = vpack.c.b16 %v2135, %v2131
    %v2576 = vpack.c.b16 %v2140, %v2136
    %v2577 = vpack.c.b16 %v2141, %v2137
    %v2578 = vpack.c.b16 %v2142, %v2138
    %v2579 = vpack.c.b16 %v2143, %v2139
    %v2580 = vpack.c.b16 %v2148, %v2144
    %v2581 = vpack.c.b16 %v2149, %v2145
    %v2582 = vpack.c.b16 %v2150, %v2146
    %v2583 = vpack.c.b16 %v2151, %v2147
    %v2584 = vpack.c.b16 %v2156, %v2152
    %v2585 = vpack.c.b16 %v2157, %v2153
    %v2586 = vpack.c.b16 %v2158, %v2154
    %v2587 = vpack.c.b16 %v2159, %v2155
    %v2588 = vpack.c.b16 %v2164, %v2160
    %v2589 = vpack.c.b16 %v2165, %v2161
    %v2590 = vpack.c.b16 %v2166, %v2162
    %v2591 = vpack.c.b16 %v2167, %v2163
    %v2592 = vpack.c.b16 %v2172, %v2168
    %v2593 = vpack.c.b16 %v2173, %v2169
    %v2594 = vpack.c.b16 %v2174, %v2170
    %v2595 = vpack.c.b16 %v2175, %v2171
    %v2596 = vpack.c.b16 %v2180, %v2176
    %v2597 = vpack.c.b16 %v2181, %v2177
    %v2598 = vpack.c.b16 %v2182, %v2178
    %v2599 = vpack.c.b16 %v2183, %v2179
    %v2600 = vpack.c.b16 %v2188, %v2184
    %v2601 = vpack.c.b16 %v2189, %v2185
    %v2602 = vpack.c.b16 %v2190, %v2186
    %v2603 = vpack.c.b16 %v2191, %v2187
    %v2604 = vpack.c.b16 %v2196, %v2192
    %v2605 = vpack.c.b16 %v2197, %v2193
    %v2606 = vpack.c.b16 %v2198, %v2194
    %v2607 = vpack.c.b16 %v2199, %v2195
    %v2608 = vpack.c.b16 %v2204, %v2200
    %v2609 = vpack.c.b16 %v2205, %v2201
    %v2610 = vpack.c.b16 %v2206, %v2202
    %v2611 = vpack.c.b16 %v2207, %v2203
    %v2612 = vpack.c.b16 %v2212, %v2208
    %v2613 = vpack.c.b16 %v2213, %v2209
    %v2614 = vpack.c.b16 %v2214, %v2210
    %v2615 = vpack.c.b16 %v2215, %v2211
    %v2616 = vpack.c.b16 %v2220, %v2216
    %v2617 = vpack.c.b16 %v2221, %v2217
    %v2618 = vpack.c.b16 %v2222, %v2218
    %v2619 = vpack.c.b16 %v2223, %v2219
    %v2620 = vpack.c.b16 %v2228, %v2224
    %v2621 = vpack.c.b16 %v2229, %v2225
    %v2622 = vpack.c.b16 %v2230, %v2226
    %v2623 = vpack.c.b16 %v2231, %v2227
    %v2624 = vpack.c.b16 %v2236, %v2232
    %v2625 = vpack.c.b16 %v2237, %v2233
    %v2626 = vpack.c.b16 %v2238, %v2234
    %v2627 = vpack.c.b16 %v2239, %v2235
    %v2628 = vpack.c.b16 %v2244, %v2240
    %v2629 = vpack.c.b16 %v2245, %v2241
    %v2630 = vpack.c.b16 %v2246, %v2242
    %v2631 = vpack.c.b16 %v2247, %v2243
    %v2632 = vpack.c.b16 %v2252, %v2248
    %v2633 = vpack.c.b16 %v2253, %v2249
    %v2634 = vpack.c.b16 %v2254, %v2250
    %v2635 = vpack.c.b16 %v2255, %v2251
    %v2636 = vpack.c.b16 %v2260, %v2256
    %v2637 = vpack.c.b16 %v2261, %v2257
    %v2638 = vpack.c.b16 %v2262, %v2258
    %v2639 = vpack.c.b16 %v2263, %v2259
    %v2640 = vpack.c.b16 %v2268, %v2264
    %v2641 = vpack.c.b16 %v2269, %v2265
    %v2642 = vpack.c.b16 %v2270, %v2266
    %v2643 = vpack.c.b16 %v2271, %v2267
    %v2644 = vpack.c.b16 %v2276, %v2272
    %v2645 = vpack.c.b16 %v2277, %v2273
    %v2646 = vpack.c.b16 %v2278, %v2274
    %v2647 = vpack.c.b16 %v2279, %v2275
    %v2648 = vpack.c.b16 %v2284, %v2280
    %v2649 = vpack.c.b16 %v2285, %v2281
    %v2650 = vpack.c.b16 %v2286, %v2282
    %v2651 = vpack.c.b16 %v2287, %v2283
    %v2652 = vpack.c.b16 %v2292, %v2288
    %v2653 = vpack.c.b16 %v2293, %v2289
    %v2654 = vpack.c.b16 %v2294, %v2290
    %v2655 = vpack.c.b16 %v2295, %v2291
    %v2656 = vpack.c.b16 %v2300, %v2296
    %v2657 = vpack.c.b16 %v2301, %v2297
    %v2658 = vpack.c.b16 %v2302, %v2298
    %v2659 = vpack.c.b16 %v2303, %v2299
    %v2660 = vpack.c.b16 %v2308, %v2304
    %v2661 = vpack.c.b16 %v2309, %v2305
    %v2662 = vpack.c.b16 %v2310, %v2306
    %v2663 = vpack.c.b16 %v2311, %v2307
    %v2664 = vpack.c.b16 %v2316, %v2312
    %v2665 = vpack.c.b16 %v2317, %v2313
    %v2666 = vpack.c.b16 %v2318, %v2314
    %v2667 = vpack.c.b16 %v2319, %v2315
    %v2668 = vpack.c.b16 %v2324, %v2320
    %v2669 = vpack.c.b16 %v2325, %v2321
    %v2670 = vpack.c.b16 %v2326, %v2322
    %v2671 = vpack.c.b16 %v2327, %v2323
    %v2672 = vpack.c.b16 %v2332, %v2328
    %v2673 = vpack.c.b16 %v2333, %v2329
    %v2674 = vpack.c.b16 %v2334, %v2330
    %v2675 = vpack.c.b16 %v2335, %v2331
    %v2676 = vpack.c.b16 %v2340, %v2336
    %v2677 = vpack.c.b16 %v2341, %v2337
    %v2678 = vpack.c.b16 %v2342, %v2338
    %v2679 = vpack.c.b16 %v2343, %v2339
    %v2680 = vpack.c.b16 %v2348, %v2344
    %v2681 = vpack.c.b16 %v2349, %v2345
    %v2682 = vpack.c.b16 %v2350, %v2346
    %v2683 = vpack.c.b16 %v2351, %v2347
    %v2684 = vpack.c.b16 %v2356, %v2352
    %v2685 = vpack.c.b16 %v2357, %v2353
    %v2686 = vpack.c.b16 %v2358, %v2354
    %v2687 = vpack.c.b16 %v2359, %v2355
    %v2688 = vpack.c.b16 %v2364, %v2360
    %v2689 = vpack.c.b16 %v2365, %v2361
    %v2690 = vpack.c.b16 %v2366, %v2362
    %v2691 = vpack.c.b16 %v2367, %v2363
    %v2692 = vpack.c.b16 %v2372, %v2368
    %v2693 = vpack.c.b16 %v2373, %v2369
    %v2694 = vpack.c.b16 %v2374, %v2370
    %v2695 = vpack.c.b16 %v2375, %v2371
    %v2696 = vpack.c.b16 %v2380, %v2376
    %v2697 = vpack.c.b16 %v2381, %v2377
    %v2698 = vpack.c.b16 %v2382, %v2378
    %v2699 = vpack.c.b16 %v2383, %v2379
    %v2700 = vpack.c.b16 %v2388, %v2384
    %v2701 = vpack.c.b16 %v2389, %v2385
    %v2702 = vpack.c.b16 %v2390, %v2386
    %v2703 = vpack.c.b16 %v2391, %v2387
    %v2704 = vpack.c.b16 %v2396, %v2392
    %v2705 = vpack.c.b16 %v2397, %v2393
    %v2706 = vpack.c.b16 %v2398, %v2394
    %v2707 = vpack.c.b16 %v2399, %v2395
    %v2708 = vpack.c.b16 %v2404, %v2400
    %v2709 = vpack.c.b16 %v2405, %v2401
    %v2710 = vpack.c.b16 %v2406, %v2402
    %v2711 = vpack.c.b16 %v2407, %v2403
    %v2712 = vpack.c.b16 %v2412, %v2408
    %v2713 = vpack.c.b16 %v2413, %v2409
    %v2714 = vpack.c.b16 %v2414, %v2410
    %v2715 = vpack.c.b16 %v2415, %v2411
    %v2716 = vpack.c.b16 %v2420, %v2416
    %v2717 = vpack.c.b16 %v2421, %v2417
    %v2718 = vpack.c.b16 %v2422, %v2418
    %v2719 = vpack.c.b16 %v2423, %v2419
    %v2720 = vpack.c.b16 %v2428, %v2424
    %v2721 = vpack.c.b16 %v2429, %v2425
    %v2722 = vpack.c.b16 %v2430, %v2426
    %v2723 = vpack.c.b16 %v2431, %v2427
    %v2724 = vpack.c.b16 %v2436, %v2432
    %v2725 = vpack.c.b16 %v2437, %v2433
    %v2726 = vpack.c.b16 %v2438, %v2434
    %v2727 = vpack.c.b16 %v2439, %v2435
    %v2728 = vpack.c.b16 %v2444, %v2440
    %v2729 = vpack.c.b16 %v2445, %v2441
    %v2730 = vpack.c.b16 %v2446, %v2442
    %v2731 = vpack.c.b16 %v2447, %v2443
    %v2732 = vpack.c.b16 %v2452, %v2448
    %v2733 = vpack.c.b16 %v2453, %v2449
    %v2734 = vpack.c.b16 %v2454, %v2450
    %v2735 = vpack.c.b16 %v2455, %v2451
    %v2736 = vpack.c.b16 %v2460, %v2456
    %v2737 = vpack.c.b16 %v2461, %v2457
    %v2738 = vpack.c.b16 %v2462, %v2458
    %v2739 = vpack.c.b16 %v2463, %v2459
    %v2740 = vpack.c.b16 %v2468, %v2464
    %v2741 = vpack.c.b16 %v2469, %v2465
    %v2742 = vpack.c.b16 %v2470, %v2466
    %v2743 = vpack.c.b16 %v2471, %v2467
    %v2744 = vpack.c.b16 %v2476, %v2472
    %v2745 = vpack.c.b16 %v2477, %v2473
    %v2746 = vpack.c.b16 %v2478, %v2474
    %v2747 = vpack.c.b16 %v2479, %v2475
    %v2748 = vpack.c.b16 %v2484, %v2480
    %v2749 = vpack.c.b16 %v2485, %v2481
    %v2750 = vpack.c.b16 %v2486, %v2482
    %v2751 = vpack.c.b16 %v2487, %v2483
    %v2752 = vpack.c.b16 %v2492, %v2488
    %v2753 = vpack.c.b16 %v2493, %v2489
    %v2754 = vpack.c.b16 %v2494, %v2490
    %v2755 = vpack.c.b16 %v2495, %v2491
    %v2756 = vpack.c.b16 %v2500, %v2496
    %v2757 = vpack.c.b16 %v2501, %v2497
    %v2758 = vpack.c.b16 %v2502, %v2498
    %v2759 = vpack.c.b16 %v2503, %v2499
    %3016 = vmatprep.subr.bf16.mxu0 %v2505
    %3017 = vmatpush1.bf16.msra.mxu0 %v2504
    %3018 = vmatprep.subr.bf16.mxu0 %v2509
    %3019 = vmatpush1.bf16.msra.mxu0 %v2508
    %3020 = vmatprep.subr.bf16.mxu0 %v2513
    %3021 = vmatpush1.bf16.msra.mxu0 %v2512
    %3022 = vmatprep.subr.bf16.mxu0 %v2517
    %3023 = vmatpush1.bf16.msra.mxu0 %v2516
    %3024 = vmatprep.subr.bf16.mxu0 %v2521
    %3025 = vmatpush1.bf16.msra.mxu0 %v2520
    %3026 = vmatprep.subr.bf16.mxu0 %v2525
    %3027 = vmatpush1.bf16.msra.mxu0 %v2524
    %3028 = vmatprep.subr.bf16.mxu0 %v2529
    %3029 = vmatpush1.bf16.msra.mxu0 %v2528
    %3030 = vmatprep.subr.bf16.mxu0 %v2533
    %3031 = vmatpush1.bf16.msra.mxu0 %v2532
    %3032 = vmatprep.subr.bf16.mxu0 %v2537
    %3033 = vmatpush1.bf16.msra.mxu0 %v2536
    %3034 = vmatprep.subr.bf16.mxu0 %v2541
    %3035 = vmatpush1.bf16.msra.mxu0 %v2540
    %3036 = vmatprep.subr.bf16.mxu0 %v2545
    %3037 = vmatpush1.bf16.msra.mxu0 %v2544
    %3038 = vmatprep.subr.bf16.mxu0 %v2549
    %3039 = vmatpush1.bf16.msra.mxu0 %v2548
    %3040 = vmatprep.subr.bf16.mxu0 %v2553
    %3041 = vmatpush1.bf16.msra.mxu0 %v2552
    %3042 = vmatprep.subr.bf16.mxu0 %v2557
    %3043 = vmatpush1.bf16.msra.mxu0 %v2556
    %3044 = vmatprep.subr.bf16.mxu0 %v2561
    %3045 = vmatpush1.bf16.msra.mxu0 %v2560
    %3046 = vmatprep.subr.bf16.mxu0 %v2565
    %3047 = vmatpush1.bf16.msra.mxu0 %v2564
    %3048 = vmatprep.mubr.bf16.mxu0 %v1451
    %3049 = vmatmul.mubr.bf16.gmra.mrb[0].mxu0 %v1450
    %v3050 = vpop.f32.mrb[0].mxu0
    %v3051 = vadd.f32 %v1719, %v3050
    %v3052 = vpop.f32.mrb[0].mxu0
    %v3053 = vadd.f32 %v1723, %v3052
    %v3054 = vpop.f32.mrb[0].mxu0
    %v3055 = vpop.f32.mrb[0].mxu0
    %3056 = vdwg.mxu0
    %3057 = vmatprep.subr.bf16.mxu0 %v2569
    %3058 = vmatpush1.bf16.msra.mxu0 %v2568
    %3059 = vmatprep.subr.bf16.mxu0 %v2573
    %3060 = vmatpush1.bf16.msra.mxu0 %v2572
    %3061 = vmatprep.subr.bf16.mxu0 %v2577
    %3062 = vmatpush1.bf16.msra.mxu0 %v2576
    %3063 = vmatprep.subr.bf16.mxu0 %v2581
    %3064 = vmatpush1.bf16.msra.mxu0 %v2580
    %3065 = vmatprep.subr.bf16.mxu0 %v2585
    %3066 = vmatpush1.bf16.msra.mxu0 %v2584
    %3067 = vmatprep.subr.bf16.mxu0 %v2589
    %3068 = vmatpush1.bf16.msra.mxu0 %v2588
    %3069 = vmatprep.subr.bf16.mxu0 %v2593
    %3070 = vmatpush1.bf16.msra.mxu0 %v2592
    %3071 = vmatprep.subr.bf16.mxu0 %v2597
    %3072 = vmatpush1.bf16.msra.mxu0 %v2596
    %3073 = vmatprep.subr.bf16.mxu0 %v2601
    %3074 = vmatpush1.bf16.msra.mxu0 %v2600
    %3075 = vmatprep.subr.bf16.mxu0 %v2605
    %3076 = vmatpush1.bf16.msra.mxu0 %v2604
    %3077 = vmatprep.subr.bf16.mxu0 %v2609
    %3078 = vmatpush1.bf16.msra.mxu0 %v2608
    %3079 = vmatprep.subr.bf16.mxu0 %v2613
    %3080 = vmatpush1.bf16.msra.mxu0 %v2612
    %3081 = vmatprep.subr.bf16.mxu0 %v2617
    %3082 = vmatpush1.bf16.msra.mxu0 %v2616
    %3083 = vmatprep.subr.bf16.mxu0 %v2621
    %3084 = vmatpush1.bf16.msra.mxu0 %v2620
    %3085 = vmatprep.subr.bf16.mxu0 %v2625
    %3086 = vmatpush1.bf16.msra.mxu0 %v2624
    %3087 = vmatprep.subr.bf16.mxu0 %v2629
    %3088 = vmatpush1.bf16.msra.mxu0 %v2628
    %3089 = vmatprep.mubr.bf16.mxu0 %v1453
    %3090 = vmatmul.mubr.bf16.gmra.mrb[0].mxu0 %v1452
    %v3091 = vpop.f32.mrb[0].mxu0
    %v3092 = vadd.f32 %v3051, %v3091
    %v3093 = vpop.f32.mrb[0].mxu0
    %v3094 = vadd.f32 %v3053, %v3093
    %v3095 = vpop.f32.mrb[0].mxu0
    %v3096 = vpop.f32.mrb[0].mxu0
    %3097 = vdwg.mxu0
    %3098 = vmatprep.subr.bf16.mxu0 %v2633
    %3099 = vmatpush1.bf16.msra.mxu0 %v2632
    %3100 = vmatprep.subr.bf16.mxu0 %v2637
    %3101 = vmatpush1.bf16.msra.mxu0 %v2636
    %3102 = vmatprep.subr.bf16.mxu0 %v2641
    %3103 = vmatpush1.bf16.msra.mxu0 %v2640
    %3104 = vmatprep.subr.bf16.mxu0 %v2645
    %3105 = vmatpush1.bf16.msra.mxu0 %v2644
    %3106 = vmatprep.subr.bf16.mxu0 %v2649
    %3107 = vmatpush1.bf16.msra.mxu0 %v2648
    %3108 = vmatprep.subr.bf16.mxu0 %v2653
    %3109 = vmatpush1.bf16.msra.mxu0 %v2652
    %3110 = vmatprep.subr.bf16.mxu0 %v2657
    %3111 = vmatpush1.bf16.msra.mxu0 %v2656
    %3112 = vmatprep.subr.bf16.mxu0 %v2661
    %3113 = vmatpush1.bf16.msra.mxu0 %v2660
    %3114 = vmatprep.subr.bf16.mxu0 %v2665
    %3115 = vmatpush1.bf16.msra.mxu0 %v2664
    %3116 = vmatprep.subr.bf16.mxu0 %v2669
    %3117 = vmatpush1.bf16.msra.mxu0 %v2668
    %3118 = vmatprep.subr.bf16.mxu0 %v2673
    %3119 = vmatpush1.bf16.msra.mxu0 %v2672
    %3120 = vmatprep.subr.bf16.mxu0 %v2677
    %3121 = vmatpush1.bf16.msra.mxu0 %v2676
    %3122 = vmatprep.subr.bf16.mxu0 %v2681
    %3123 = vmatpush1.bf16.msra.mxu0 %v2680
    %3124 = vmatprep.subr.bf16.mxu0 %v2685
    %3125 = vmatpush1.bf16.msra.mxu0 %v2684
    %3126 = vmatprep.subr.bf16.mxu0 %v2689
    %3127 = vmatpush1.bf16.msra.mxu0 %v2688
    %3128 = vmatprep.subr.bf16.mxu0 %v2693
    %3129 = vmatpush1.bf16.msra.mxu0 %v2692
    %3130 = vmatprep.mubr.bf16.mxu0 %v1455
    %3131 = vmatmul.mubr.bf16.gmra.mrb[0].mxu0 %v1454
    %v3132 = vpop.f32.mrb[0].mxu0
    %v3133 = vadd.f32 %v3092, %v3132
    %v3134 = vpop.f32.mrb[0].mxu0
    %v3135 = vadd.f32 %v3094, %v3134
    %v3136 = vpop.f32.mrb[0].mxu0
    %v3137 = vpop.f32.mrb[0].mxu0
    %3138 = vdwg.mxu0
    %3139 = vmatprep.subr.bf16.mxu0 %v2697
    %3140 = vmatpush1.bf16.msra.mxu0 %v2696
    %3141 = vmatprep.subr.bf16.mxu0 %v2701
    %3142 = vmatpush1.bf16.msra.mxu0 %v2700
    %3143 = vmatprep.subr.bf16.mxu0 %v2705
    %3144 = vmatpush1.bf16.msra.mxu0 %v2704
    %3145 = vmatprep.subr.bf16.mxu0 %v2709
    %3146 = vmatpush1.bf16.msra.mxu0 %v2708
    %3147 = vmatprep.subr.bf16.mxu0 %v2713
    %3148 = vmatpush1.bf16.msra.mxu0 %v2712
    %3149 = vmatprep.subr.bf16.mxu0 %v2717
    %3150 = vmatpush1.bf16.msra.mxu0 %v2716
    %3151 = vmatprep.subr.bf16.mxu0 %v2721
    %3152 = vmatpush1.bf16.msra.mxu0 %v2720
    %3153 = vmatprep.subr.bf16.mxu0 %v2725
    %3154 = vmatpush1.bf16.msra.mxu0 %v2724
    %3155 = vmatprep.subr.bf16.mxu0 %v2729
    %3156 = vmatpush1.bf16.msra.mxu0 %v2728
    %3157 = vmatprep.subr.bf16.mxu0 %v2733
    %3158 = vmatpush1.bf16.msra.mxu0 %v2732
    %3159 = vmatprep.subr.bf16.mxu0 %v2737
    %3160 = vmatpush1.bf16.msra.mxu0 %v2736
    %3161 = vmatprep.subr.bf16.mxu0 %v2741
    %3162 = vmatpush1.bf16.msra.mxu0 %v2740
    %3163 = vmatprep.subr.bf16.mxu0 %v2745
    %3164 = vmatpush1.bf16.msra.mxu0 %v2744
    %3165 = vmatprep.subr.bf16.mxu0 %v2749
    %3166 = vmatpush1.bf16.msra.mxu0 %v2748
    %3167 = vmatprep.subr.bf16.mxu0 %v2753
    %3168 = vmatpush1.bf16.msra.mxu0 %v2752
    %3169 = vmatprep.subr.bf16.mxu0 %v2757
    %3170 = vmatpush1.bf16.msra.mxu0 %v2756
    %3171 = vmatprep.mubr.bf16.mxu0 %v1457
    %3172 = vmatmul.mubr.bf16.gmra.mrb[0].mxu0 %v1456
    %v3173 = vpop.f32.mrb[0].mxu0
    %v3174 = vadd.f32 %v3133, %v3173
    %v3175 = vpop.f32.mrb[0].mxu0
    %v3176 = vadd.f32 %v3135, %v3175
    %v3177 = vpop.f32.mrb[0].mxu0
    %v3178 = vpop.f32.mrb[0].mxu0
    %3179 = vdwg.mxu0
    %3180 = vmatprep.subr.bf16.mxu0 %v2507
    %3181 = vmatpush1.bf16.msra.mxu0 %v2506
    %3182 = vmatprep.subr.bf16.mxu0 %v2511
    %3183 = vmatpush1.bf16.msra.mxu0 %v2510
    %3184 = vmatprep.subr.bf16.mxu0 %v2515
    %3185 = vmatpush1.bf16.msra.mxu0 %v2514
    %3186 = vmatprep.subr.bf16.mxu0 %v2519
    %3187 = vmatpush1.bf16.msra.mxu0 %v2518
    %3188 = vmatprep.subr.bf16.mxu0 %v2523
    %3189 = vmatpush1.bf16.msra.mxu0 %v2522
    %3190 = vmatprep.subr.bf16.mxu0 %v2527
    %3191 = vmatpush1.bf16.msra.mxu0 %v2526
    %3192 = vmatprep.subr.bf16.mxu0 %v2531
    %3193 = vmatpush1.bf16.msra.mxu0 %v2530
    %3194 = vmatprep.subr.bf16.mxu0 %v2535
    %3195 = vmatpush1.bf16.msra.mxu0 %v2534
    %3196 = vmatprep.subr.bf16.mxu0 %v2539
    %3197 = vmatpush1.bf16.msra.mxu0 %v2538
    %3198 = vmatprep.subr.bf16.mxu0 %v2543
    %3199 = vmatpush1.bf16.msra.mxu0 %v2542
    %3200 = vmatprep.subr.bf16.mxu0 %v2547
    %3201 = vmatpush1.bf16.msra.mxu0 %v2546
    %3202 = vmatprep.subr.bf16.mxu0 %v2551
    %3203 = vmatpush1.bf16.msra.mxu0 %v2550
    %3204 = vmatprep.subr.bf16.mxu0 %v2555
    %3205 = vmatpush1.bf16.msra.mxu0 %v2554
    %3206 = vmatprep.subr.bf16.mxu0 %v2559
    %3207 = vmatpush1.bf16.msra.mxu0 %v2558
    %3208 = vmatprep.subr.bf16.mxu0 %v2563
    %3209 = vmatpush1.bf16.msra.mxu0 %v2562
    %3210 = vmatprep.subr.bf16.mxu0 %v2567
    %3211 = vmatpush1.bf16.msra.mxu0 %v2566
    %3212 = vmatprep.mubr.bf16.mxu0 %v1451
    %3213 = vmatmul.mubr.bf16.gmra.mrb[0].mxu0 %v1450
    %v3214 = vpop.f32.mrb[0].mxu0
    %v3215 = vadd.f32 %v1727, %v3214
    %v3216 = vpop.f32.mrb[0].mxu0
    %v3217 = vadd.f32 %v1731, %v3216
    %v3218 = vpop.f32.mrb[0].mxu0
    %v3219 = vpop.f32.mrb[0].mxu0
    %3220 = vdwg.mxu0
    %3221 = vmatprep.subr.bf16.mxu0 %v2571
    %3222 = vmatpush1.bf16.msra.mxu0 %v2570
    %3223 = vmatprep.subr.bf16.mxu0 %v2575
    %3224 = vmatpush1.bf16.msra.mxu0 %v2574
    %3225 = vmatprep.subr.bf16.mxu0 %v2579
    %3226 = vmatpush1.bf16.msra.mxu0 %v2578
    %3227 = vmatprep.subr.bf16.mxu0 %v2583
    %3228 = vmatpush1.bf16.msra.mxu0 %v2582
    %3229 = vmatprep.subr.bf16.mxu0 %v2587
    %3230 = vmatpush1.bf16.msra.mxu0 %v2586
    %3231 = vmatprep.subr.bf16.mxu0 %v2591
    %3232 = vmatpush1.bf16.msra.mxu0 %v2590
    %3233 = vmatprep.subr.bf16.mxu0 %v2595
    %3234 = vmatpush1.bf16.msra.mxu0 %v2594
    %3235 = vmatprep.subr.bf16.mxu0 %v2599
    %3236 = vmatpush1.bf16.msra.mxu0 %v2598
    %3237 = vmatprep.subr.bf16.mxu0 %v2603
    %3238 = vmatpush1.bf16.msra.mxu0 %v2602
    %3239 = vmatprep.subr.bf16.mxu0 %v2607
    %3240 = vmatpush1.bf16.msra.mxu0 %v2606
    %3241 = vmatprep.subr.bf16.mxu0 %v2611
    %3242 = vmatpush1.bf16.msra.mxu0 %v2610
    %3243 = vmatprep.subr.bf16.mxu0 %v2615
    %3244 = vmatpush1.bf16.msra.mxu0 %v2614
    %3245 = vmatprep.subr.bf16.mxu0 %v2619
    %3246 = vmatpush1.bf16.msra.mxu0 %v2618
    %3247 = vmatprep.subr.bf16.mxu0 %v2623
    %3248 = vmatpush1.bf16.msra.mxu0 %v2622
    %3249 = vmatprep.subr.bf16.mxu0 %v2627
    %3250 = vmatpush1.bf16.msra.mxu0 %v2626
    %3251 = vmatprep.subr.bf16.mxu0 %v2631
    %3252 = vmatpush1.bf16.msra.mxu0 %v2630
    %3253 = vmatprep.mubr.bf16.mxu0 %v1453
    %3254 = vmatmul.mubr.bf16.gmra.mrb[0].mxu0 %v1452
    %v3255 = vpop.f32.mrb[0].mxu0
    %v3256 = vadd.f32 %v3215, %v3255
    %v3257 = vpop.f32.mrb[0].mxu0
    %v3258 = vadd.f32 %v3217, %v3257
    %v3259 = vpop.f32.mrb[0].mxu0
    %v3260 = vpop.f32.mrb[0].mxu0
    %3261 = vdwg.mxu0
    %3262 = vmatprep.subr.bf16.mxu0 %v2635
    %3263 = vmatpush1.bf16.msra.mxu0 %v2634
    %3264 = vmatprep.subr.bf16.mxu0 %v2639
    %3265 = vmatpush1.bf16.msra.mxu0 %v2638
    %3266 = vmatprep.subr.bf16.mxu0 %v2643
    %3267 = vmatpush1.bf16.msra.mxu0 %v2642
    %3268 = vmatprep.subr.bf16.mxu0 %v2647
    %3269 = vmatpush1.bf16.msra.mxu0 %v2646
    %3270 = vmatprep.subr.bf16.mxu0 %v2651
    %3271 = vmatpush1.bf16.msra.mxu0 %v2650
    %3272 = vmatprep.subr.bf16.mxu0 %v2655
    %3273 = vmatpush1.bf16.msra.mxu0 %v2654
    %3274 = vmatprep.subr.bf16.mxu0 %v2659
    %3275 = vmatpush1.bf16.msra.mxu0 %v2658
    %3276 = vmatprep.subr.bf16.mxu0 %v2663
    %3277 = vmatpush1.bf16.msra.mxu0 %v2662
    %3278 = vmatprep.subr.bf16.mxu0 %v2667
    %3279 = vmatpush1.bf16.msra.mxu0 %v2666
    %3280 = vmatprep.subr.bf16.mxu0 %v2671
    %3281 = vmatpush1.bf16.msra.mxu0 %v2670
    %3282 = vmatprep.subr.bf16.mxu0 %v2675
    %3283 = vmatpush1.bf16.msra.mxu0 %v2674
    %3284 = vmatprep.subr.bf16.mxu0 %v2679
    %3285 = vmatpush1.bf16.msra.mxu0 %v2678
    %3286 = vmatprep.subr.bf16.mxu0 %v2683
    %3287 = vmatpush1.bf16.msra.mxu0 %v2682
    %3288 = vmatprep.subr.bf16.mxu0 %v2687
    %3289 = vmatpush1.bf16.msra.mxu0 %v2686
    %3290 = vmatprep.subr.bf16.mxu0 %v2691
    %3291 = vmatpush1.bf16.msra.mxu0 %v2690
    %3292 = vmatprep.subr.bf16.mxu0 %v2695
    %3293 = vmatpush1.bf16.msra.mxu0 %v2694
    %3294 = vmatprep.mubr.bf16.mxu0 %v1455
    %3295 = vmatmul.mubr.bf16.gmra.mrb[0].mxu0 %v1454
    %v3296 = vpop.f32.mrb[0].mxu0
    %v3297 = vadd.f32 %v3256, %v3296
    %v3298 = vpop.f32.mrb[0].mxu0
    %v3299 = vadd.f32 %v3258, %v3298
    %v3300 = vpop.f32.mrb[0].mxu0
    %v3301 = vpop.f32.mrb[0].mxu0
    %3302 = vdwg.mxu0
    %3303 = vmatprep.subr.bf16.mxu0 %v2699
    %3304 = vmatpush1.bf16.msra.mxu0 %v2698
    %3305 = vmatprep.subr.bf16.mxu0 %v2703
    %3306 = vmatpush1.bf16.msra.mxu0 %v2702
    %3307 = vmatprep.subr.bf16.mxu0 %v2707
    %3308 = vmatpush1.bf16.msra.mxu0 %v2706
    %3309 = vmatprep.subr.bf16.mxu0 %v2711
    %3310 = vmatpush1.bf16.msra.mxu0 %v2710
    %3311 = vmatprep.subr.bf16.mxu0 %v2715
    %3312 = vmatpush1.bf16.msra.mxu0 %v2714
    %3313 = vmatprep.subr.bf16.mxu0 %v2719
    %3314 = vmatpush1.bf16.msra.mxu0 %v2718
    %3315 = vmatprep.subr.bf16.mxu0 %v2723
    %3316 = vmatpush1.bf16.msra.mxu0 %v2722
    %3317 = vmatprep.subr.bf16.mxu0 %v2727
    %3318 = vmatpush1.bf16.msra.mxu0 %v2726
    %3319 = vmatprep.subr.bf16.mxu0 %v2731
    %3320 = vmatpush1.bf16.msra.mxu0 %v2730
    %3321 = vmatprep.subr.bf16.mxu0 %v2735
    %3322 = vmatpush1.bf16.msra.mxu0 %v2734
    %3323 = vmatprep.subr.bf16.mxu0 %v2739
    %3324 = vmatpush1.bf16.msra.mxu0 %v2738
    %3325 = vmatprep.subr.bf16.mxu0 %v2743
    %3326 = vmatpush1.bf16.msra.mxu0 %v2742
    %3327 = vmatprep.subr.bf16.mxu0 %v2747
    %3328 = vmatpush1.bf16.msra.mxu0 %v2746
    %3329 = vmatprep.subr.bf16.mxu0 %v2751
    %3330 = vmatpush1.bf16.msra.mxu0 %v2750
    %3331 = vmatprep.subr.bf16.mxu0 %v2755
    %3332 = vmatpush1.bf16.msra.mxu0 %v2754
    %3333 = vmatprep.subr.bf16.mxu0 %v2759
    %3334 = vmatpush1.bf16.msra.mxu0 %v2758
    %3335 = vmatprep.mubr.bf16.mxu0 %v1457
    %3336 = vmatmul.mubr.bf16.gmra.mrb[0].mxu0 %v1456
    %v3337 = vpop.f32.mrb[0].mxu0
    %v3338 = vadd.f32 %v3297, %v3337
    %v3339 = vpop.f32.mrb[0].mxu0
    %v3340 = vadd.f32 %v3299, %v3339
    %v3341 = vpop.f32.mrb[0].mxu0
    %v3342 = vpop.f32.mrb[0].mxu0
    %3343 = vdwg.mxu0
    %v3344 = vpack.c.bf16 %v3174, %v3174
    %v3345 = vpack.c.bf16 %v3176, %v3176
    %v3346 = vpack.c.bf16 %v3338, %v3338
    %v3347 = vpack.c.bf16 %v3340, %v3340
    %v3348 = vld [vmem:[%s8] sm:$0xf]
    %v3349 = vld [vmem:[%s8 + $0x4] sm:$0xf]
    %v3350 = vld [vmem:[%s8 + $0x8] sm:$0xf]
    %v3351 = vld [vmem:[%s8 + $0xc] sm:$0xf]
    %v3352 = vld [vmem:[%s8 + $0x10] sm:$0xf]
    %v3353 = vld [vmem:[%s8 + $0x14] sm:$0xf]
    %v3354 = vld [vmem:[%s8 + $0x18] sm:$0xf]
    %v3355 = vld [vmem:[%s8 + $0x1c] sm:$0xf]
    %v3356 = vld [vmem:[%s8 + $0x20] sm:$0xf]
    %v3357 = vld [vmem:[%s8 + $0x24] sm:$0xf]
    %v3358 = vld [vmem:[%s8 + $0x28] sm:$0xf]
    %v3359 = vld [vmem:[%s8 + $0x2c] sm:$0xf]
    %v3360 = vld [vmem:[%s8 + $0x30] sm:$0xf]
    %v3361 = vld [vmem:[%s8 + $0x34] sm:$0xf]
    %v3362 = vld [vmem:[%s8 + $0x38] sm:$0xf]
    %v3363 = vld [vmem:[%s8 + $0x3c] sm:$0xf]
    %v3364 = vld [vmem:[%s8 + $0x40] sm:$0xf]
    %v3365 = vld [vmem:[%s8 + $0x44] sm:$0xf]
    %v3366 = vld [vmem:[%s8 + $0x48] sm:$0xf]
    %v3367 = vld [vmem:[%s8 + $0x4c] sm:$0xf]
    %v3368 = vld [vmem:[%s8 + $0x50] sm:$0xf]
    %v3369 = vld [vmem:[%s8 + $0x54] sm:$0xf]
    %v3370 = vld [vmem:[%s8 + $0x58] sm:$0xf]
    %v3371 = vld [vmem:[%s8 + $0x5c] sm:$0xf]
    %v3372 = vld [vmem:[%s8 + $0x60] sm:$0xf]
    %v3373 = vld [vmem:[%s8 + $0x64] sm:$0xf]
    %v3374 = vld [vmem:[%s8 + $0x68] sm:$0xf]
    %v3375 = vld [vmem:[%s8 + $0x6c] sm:$0xf]
    %v3376 = vld [vmem:[%s8 + $0x70] sm:$0xf]
    %v3377 = vld [vmem:[%s8 + $0x74] sm:$0xf]
    %v3378 = vld [vmem:[%s8 + $0x78] sm:$0xf]
    %v3379 = vld [vmem:[%s8 + $0x7c] sm:$0xf]
    %v3380 = vld [vmem:[%s8 + $0x80] sm:$0xf]
    %v3381 = vld [vmem:[%s8 + $0x84] sm:$0xf]
    %v3382 = vld [vmem:[%s8 + $0x88] sm:$0xf]
    %v3383 = vld [vmem:[%s8 + $0x8c] sm:$0xf]
    %v3384 = vld [vmem:[%s8 + $0x90] sm:$0xf]
    %v3385 = vld [vmem:[%s8 + $0x94] sm:$0xf]
    %v3386 = vld [vmem:[%s8 + $0x98] sm:$0xf]
    %v3387 = vld [vmem:[%s8 + $0x9c] sm:$0xf]
    %v3388 = vld [vmem:[%s8 + $0xa0] sm:$0xf]
    %v3389 = vld [vmem:[%s8 + $0xa4] sm:$0xf]
    %v3390 = vld [vmem:[%s8 + $0xa8] sm:$0xf]
    %v3391 = vld [vmem:[%s8 + $0xac] sm:$0xf]
    %v3392 = vld [vmem:[%s8 + $0xb0] sm:$0xf]
    %v3393 = vld [vmem:[%s8 + $0xb4] sm:$0xf]
    %v3394 = vld [vmem:[%s8 + $0xb8] sm:$0xf]
    %v3395 = vld [vmem:[%s8 + $0xbc] sm:$0xf]
    %v3396 = vld [vmem:[%s8 + $0xc0] sm:$0xf]
    %v3397 = vld [vmem:[%s8 + $0xc4] sm:$0xf]
    %v3398 = vld [vmem:[%s8 + $0xc8] sm:$0xf]
    %v3399 = vld [vmem:[%s8 + $0xcc] sm:$0xf]
    %v3400 = vld [vmem:[%s8 + $0xd0] sm:$0xf]
    %v3401 = vld [vmem:[%s8 + $0xd4] sm:$0xf]
    %v3402 = vld [vmem:[%s8 + $0xd8] sm:$0xf]
    %v3403 = vld [vmem:[%s8 + $0xdc] sm:$0xf]
    %v3404 = vld [vmem:[%s8 + $0xe0] sm:$0xf]
    %v3405 = vld [vmem:[%s8 + $0xe4] sm:$0xf]
    %v3406 = vld [vmem:[%s8 + $0xe8] sm:$0xf]
    %v3407 = vld [vmem:[%s8 + $0xec] sm:$0xf]
    %v3408 = vld [vmem:[%s8 + $0xf0] sm:$0xf]
    %v3409 = vld [vmem:[%s8 + $0xf4] sm:$0xf]
    %v3410 = vld [vmem:[%s8 + $0xf8] sm:$0xf]
    %v3411 = vld [vmem:[%s8 + $0xfc] sm:$0xf]
    %v3412 = vld [vmem:[%s9] sm:$0x1]
    %v3414 = vlaneseq
    %v3415 = vshrl.u32 %v3414, 7
    %v3416 = vsub.s32 0, %v3415
    %v3417 = vrot.slane %v3412, %v3416
    %v3483 = vunpack.c.l.b16 %v3348
    %v3484 = vunpack.c.l.b16 %v3349
    %v3485 = vunpack.c.l.b16 %v3350
    %v3486 = vunpack.c.l.b16 %v3351
    %v3487 = vunpack.c.l.b16 %v3352
    %v3488 = vunpack.c.l.b16 %v3353
    %v3489 = vunpack.c.l.b16 %v3354
    %v3490 = vunpack.c.l.b16 %v3355
    %v3491 = vunpack.c.l.b16 %v3356
    %v3492 = vunpack.c.l.b16 %v3357
    %v3493 = vunpack.c.l.b16 %v3358
    %v3494 = vunpack.c.l.b16 %v3359
    %v3495 = vunpack.c.l.b16 %v3360
    %v3496 = vunpack.c.l.b16 %v3361
    %v3497 = vunpack.c.l.b16 %v3362
    %v3498 = vunpack.c.l.b16 %v3363
    %v3499 = vunpack.c.l.b16 %v3364
    %v3500 = vunpack.c.l.b16 %v3365
    %v3501 = vunpack.c.l.b16 %v3366
    %v3502 = vunpack.c.l.b16 %v3367
    %v3503 = vunpack.c.l.b16 %v3368
    %v3504 = vunpack.c.l.b16 %v3369
    %v3505 = vunpack.c.l.b16 %v3370
    %v3506 = vunpack.c.l.b16 %v3371
    %v3507 = vunpack.c.l.b16 %v3372
    %v3508 = vunpack.c.l.b16 %v3373
    %v3509 = vunpack.c.l.b16 %v3374
    %v3510 = vunpack.c.l.b16 %v3375
    %v3511 = vunpack.c.l.b16 %v3376
    %v3512 = vunpack.c.l.b16 %v3377
    %v3513 = vunpack.c.l.b16 %v3378
    %v3514 = vunpack.c.l.b16 %v3379
    %v3515 = vunpack.c.l.b16 %v3380
    %v3516 = vunpack.c.l.b16 %v3381
    %v3517 = vunpack.c.l.b16 %v3382
    %v3518 = vunpack.c.l.b16 %v3383
    %v3519 = vunpack.c.l.b16 %v3384
    %v3520 = vunpack.c.l.b16 %v3385
    %v3521 = vunpack.c.l.b16 %v3386
    %v3522 = vunpack.c.l.b16 %v3387
    %v3523 = vunpack.c.l.b16 %v3388
    %v3524 = vunpack.c.l.b16 %v3389
    %v3525 = vunpack.c.l.b16 %v3390
    %v3526 = vunpack.c.l.b16 %v3391
    %v3527 = vunpack.c.l.b16 %v3392
    %v3528 = vunpack.c.l.b16 %v3393
    %v3529 = vunpack.c.l.b16 %v3394
    %v3530 = vunpack.c.l.b16 %v3395
    %v3531 = vunpack.c.l.b16 %v3396
    %v3532 = vunpack.c.l.b16 %v3397
    %v3533 = vunpack.c.l.b16 %v3398
    %v3534 = vunpack.c.l.b16 %v3399
    %v3535 = vunpack.c.l.b16 %v3400
    %v3536 = vunpack.c.l.b16 %v3401
    %v3537 = vunpack.c.l.b16 %v3402
    %v3538 = vunpack.c.l.b16 %v3403
    %v3539 = vunpack.c.l.b16 %v3404
    %v3540 = vunpack.c.l.b16 %v3405
    %v3541 = vunpack.c.l.b16 %v3406
    %v3542 = vunpack.c.l.b16 %v3407
    %v3543 = vunpack.c.l.b16 %v3408
    %v3544 = vunpack.c.l.b16 %v3409
    %v3545 = vunpack.c.l.b16 %v3410
    %v3546 = vunpack.c.l.b16 %v3411
    %v3547 = vpack.c.b16 %v3484, %v3483
    %v3548 = vpack.c.b16 %v3486, %v3485
    %v3549 = vpack.c.b16 %v3488, %v3487
    %v3550 = vpack.c.b16 %v3490, %v3489
    %v3551 = vpack.c.b16 %v3492, %v3491
    %v3552 = vpack.c.b16 %v3494, %v3493
    %v3553 = vpack.c.b16 %v3496, %v3495
    %v3554 = vpack.c.b16 %v3498, %v3497
    %v3555 = vpack.c.b16 %v3500, %v3499
    %v3556 = vpack.c.b16 %v3502, %v3501
    %v3557 = vpack.c.b16 %v3504, %v3503
    %v3558 = vpack.c.b16 %v3506, %v3505
    %v3559 = vpack.c.b16 %v3508, %v3507
    %v3560 = vpack.c.b16 %v3510, %v3509
    %v3561 = vpack.c.b16 %v3512, %v3511
    %v3562 = vpack.c.b16 %v3514, %v3513
    %v3563 = vpack.c.b16 %v3516, %v3515
    %v3564 = vpack.c.b16 %v3518, %v3517
    %v3565 = vpack.c.b16 %v3520, %v3519
    %v3566 = vpack.c.b16 %v3522, %v3521
    %v3567 = vpack.c.b16 %v3524, %v3523
    %v3568 = vpack.c.b16 %v3526, %v3525
    %v3569 = vpack.c.b16 %v3528, %v3527
    %v3570 = vpack.c.b16 %v3530, %v3529
    %v3571 = vpack.c.b16 %v3532, %v3531
    %v3572 = vpack.c.b16 %v3534, %v3533
    %v3573 = vpack.c.b16 %v3536, %v3535
    %v3574 = vpack.c.b16 %v3538, %v3537
    %v3575 = vpack.c.b16 %v3540, %v3539
    %v3576 = vpack.c.b16 %v3542, %v3541
    %v3577 = vpack.c.b16 %v3544, %v3543
    %v3578 = vpack.c.b16 %v3546, %v3545
    %3611 = vmatprep.subr.bf16.mxu0 0
    %3612 = vmatpush1.bf16.msra.mxu0 %v3547
    %3613 = vmatprep.subr.bf16.mxu0 0
    %3614 = vmatpush1.bf16.msra.mxu0 %v3548
    %3615 = vmatprep.subr.bf16.mxu0 0
    %3616 = vmatpush1.bf16.msra.mxu0 %v3549
    %3617 = vmatprep.subr.bf16.mxu0 0
    %3618 = vmatpush1.bf16.msra.mxu0 %v3550
    %3619 = vmatprep.subr.bf16.mxu0 0
    %3620 = vmatpush1.bf16.msra.mxu0 %v3551
    %3621 = vmatprep.subr.bf16.mxu0 0
    %3622 = vmatpush1.bf16.msra.mxu0 %v3552
    %3623 = vmatprep.subr.bf16.mxu0 0
    %3624 = vmatpush1.bf16.msra.mxu0 %v3553
    %3625 = vmatprep.subr.bf16.mxu0 0
    %3626 = vmatpush1.bf16.msra.mxu0 %v3554
    %3627 = vmatprep.subr.bf16.mxu0 0
    %3628 = vmatpush1.bf16.msra.mxu0 %v3555
    %3629 = vmatprep.subr.bf16.mxu0 0
    %3630 = vmatpush1.bf16.msra.mxu0 %v3556
    %3631 = vmatprep.subr.bf16.mxu0 0
    %3632 = vmatpush1.bf16.msra.mxu0 %v3557
    %3633 = vmatprep.subr.bf16.mxu0 0
    %3634 = vmatpush1.bf16.msra.mxu0 %v3558
    %3635 = vmatprep.subr.bf16.mxu0 0
    %3636 = vmatpush1.bf16.msra.mxu0 %v3559
    %3637 = vmatprep.subr.bf16.mxu0 0
    %3638 = vmatpush1.bf16.msra.mxu0 %v3560
    %3639 = vmatprep.subr.bf16.mxu0 0
    %3640 = vmatpush1.bf16.msra.mxu0 %v3561
    %3641 = vmatprep.subr.bf16.mxu0 0
    %3642 = vmatpush1.bf16.msra.mxu0 %v3562
    %3643 = vmatprep.mubr.bf16.mxu0 %v3345
    %3644 = vmatmul.mubr.bf16.gmra.mrb[0].mxu0 %v3344
    %v3645 = vpop.f32.mrb[0].mxu0
    %v3646 = vadd.f32 %v3417, %v3645
    %v3647 = vpop.f32.mrb[0].mxu0
    %v3648 = vpop.f32.mrb[0].mxu0
    %v3649 = vpop.f32.mrb[0].mxu0
    %3650 = vdwg.mxu0
    %3651 = vmatprep.subr.bf16.mxu0 0
    %3652 = vmatpush1.bf16.msra.mxu0 %v3563
    %3653 = vmatprep.subr.bf16.mxu0 0
    %3654 = vmatpush1.bf16.msra.mxu0 %v3564
    %3655 = vmatprep.subr.bf16.mxu0 0
    %3656 = vmatpush1.bf16.msra.mxu0 %v3565
    %3657 = vmatprep.subr.bf16.mxu0 0
    %3658 = vmatpush1.bf16.msra.mxu0 %v3566
    %3659 = vmatprep.subr.bf16.mxu0 0
    %3660 = vmatpush1.bf16.msra.mxu0 %v3567
    %3661 = vmatprep.subr.bf16.mxu0 0
    %3662 = vmatpush1.bf16.msra.mxu0 %v3568
    %3663 = vmatprep.subr.bf16.mxu0 0
    %3664 = vmatpush1.bf16.msra.mxu0 %v3569
    %3665 = vmatprep.subr.bf16.mxu0 0
    %3666 = vmatpush1.bf16.msra.mxu0 %v3570
    %3667 = vmatprep.subr.bf16.mxu0 0
    %3668 = vmatpush1.bf16.msra.mxu0 %v3571
    %3669 = vmatprep.subr.bf16.mxu0 0
    %3670 = vmatpush1.bf16.msra.mxu0 %v3572
    %3671 = vmatprep.subr.bf16.mxu0 0
    %3672 = vmatpush1.bf16.msra.mxu0 %v3573
    %3673 = vmatprep.subr.bf16.mxu0 0
    %3674 = vmatpush1.bf16.msra.mxu0 %v3574
    %3675 = vmatprep.subr.bf16.mxu0 0
    %3676 = vmatpush1.bf16.msra.mxu0 %v3575
    %3677 = vmatprep.subr.bf16.mxu0 0
    %3678 = vmatpush1.bf16.msra.mxu0 %v3576
    %3679 = vmatprep.subr.bf16.mxu0 0
    %3680 = vmatpush1.bf16.msra.mxu0 %v3577
    %3681 = vmatprep.subr.bf16.mxu0 0
    %3682 = vmatpush1.bf16.msra.mxu0 %v3578
    %3683 = vmatprep.mubr.bf16.mxu0 %v3347
    %3684 = vmatmul.mubr.bf16.gmra.mrb[0].mxu0 %v3346
    %v3685 = vpop.f32.mrb[0].mxu0
    %v3686 = vadd.f32 %v3646, %v3685
    %v3687 = vpop.f32.mrb[0].mxu0
    %v3688 = vpop.f32.mrb[0].mxu0
    %v3689 = vpop.f32.mrb[0].mxu0
    %3690 = vdwg.mxu0
    %3691 = vst [vmem:[#allocation2] sm:$0x3] %v3686
    // Predicated region
    $region42: #{timm_model_forward.1} parent=1 // pred_check
      _
    $region43: #{timm_model_forward.1} parent=1 // pred_check_branch
      %3693 = sbr.rel (0) target = $region45
    $region44: #{timm_model_forward.1} parent=1 // pred_region
      %s3695 = ssub.s32 32, 32
      %3696 = vsyncadd [#allocation3], %s3695
      %s3698 = sshll.u32 [#allocation2], 4
      %s3699 = int_to_ptr.vmem [resolvable:$true] %s3698
      %3701 = dma.vmem_to_hbm [thread:$0]  %s3699, 32, %s10, [#allocation3]
    $region45: #{timm_model_forward.1} parent=1 // pred_fallthru
      _
    // Predicated region
    $region46: #{timm_model_forward.1} parent=1 // pred_check
      _
    $region47: #{timm_model_forward.1} parent=1 // pred_check_branch
      %3703 = sbr.rel (0) target = $region49
    $region48: #{timm_model_forward.1} parent=1 // pred_region
      %3704 = dma.done [#allocation3], 32
    $region49: #{timm_model_forward.1} parent=1 // pred_fallthru
      _
    %3705 = vsyncpa [#allocation3], 1

</llo_original>
